<compile_context>
chip_gen: v7x
topology: tpu7x:2x2x1
jax: 0.10.0
libtpu: 0.0.40
codegen_flags: <defaults>
</compile_context>

<pallas_src>
import jax
import jax.numpy as jnp
from jax.experimental import pallas as pl
from jax.experimental.pallas import tpu as pltpu


# ----------------------------------------------------------------------------- helpers
def _pick_steps(m_rows, unit=16, target_rows=1024):
    """Number of grid steps: tiles are multiples of `unit`, divide m_rows exactly,
    are roughly <= target_rows, and there are >=2 steps whenever possible (v7x)."""
    n_units = m_rows // unit
    if n_units <= 1:
        return 1
    lo = max(2, -(-m_rows // target_rows))
    for g in range(lo, n_units + 1):
        if n_units % g == 0:
            return g
    return n_units


def _im2col_pooled(x_nhwc, kh, kw):
    """(B, H, W, C) -> (4, B*PH*PW, C*kh*kw) bf16 patches, phase-major.

    Phase axis = the 2x2 max-pool phase (dy*2+dx); row axis ordered (b, ph, pw);
    K ordered (c, i, j) to match PyTorch conv weight.reshape(C_out, C_in*kh*kw)."""
    B, H, W, C = x_nhwc.shape
    OH, OW = H - kh + 1, W - kw + 1
    PH, PW = OH // 2, OW // 2
    cols = []
    for i in range(kh):
        for j in range(kw):
            cols.append(x_nhwc[:, i:i + OH, j:j + OW, :])     # (B, OH, OW, C)
    p = jnp.stack(cols, axis=-1)                              # (B, OH, OW, C, kh*kw)
    p = p.reshape(B, PH, 2, PW, 2, C * kh * kw)               # split OH,OW into pool phases
    p = jnp.transpose(p, (2, 4, 0, 1, 3, 5))                  # (dy, dx, b, ph, pw, K)
    return p.reshape(4, B * PH * PW, C * kh * kw)


# ----------------------------------------------------------------- Pallas kernel bodies
def _conv_pool_relu_kernel(p_ref, w_ref, b_ref, o_ref):
    # p_ref: (4, tm, K) bf16 (phase-major patches), w_ref: (K, N) bf16,
    # b_ref: (1, N) f32, o_ref: (tm, N) bf16  -- pooled + bias + ReLU output.
    w = w_ref[...]
    a0 = jnp.dot(p_ref[0], w, preferred_element_type=jnp.float32)
    a1 = jnp.dot(p_ref[1], w, preferred_element_type=jnp.float32)
    a2 = jnp.dot(p_ref[2], w, preferred_element_type=jnp.float32)
    a3 = jnp.dot(p_ref[3], w, preferred_element_type=jnp.float32)
    pooled = jnp.maximum(jnp.maximum(a0, a1), jnp.maximum(a2, a3))
    o_ref[...] = jnp.maximum(pooled + b_ref[...], 0.0).astype(o_ref.dtype)


def _head_kernel(x_ref, w1_ref, b1_ref, w2_ref, b2_ref, o_ref):
    # fc1 + ReLU + fc2 + log_softmax.  All dims are true (unpadded) sizes, so no
    # lane masking is needed before the log-softmax.
    h = jnp.dot(x_ref[...], w1_ref[...], preferred_element_type=jnp.float32)
    h = jnp.maximum(h + b1_ref[...], 0.0)
    # TODO(synk): F.dropout(training=True) mask not emitted (identity at inference).
    logits = jnp.dot(h.astype(w2_ref.dtype), w2_ref[...],
                     preferred_element_type=jnp.float32) + b2_ref[...]
    m = jnp.max(logits, axis=1, keepdims=True)
    shifted = logits - m
    lse = jnp.log(jnp.sum(jnp.exp(shifted), axis=1, keepdims=True))
    o_ref[...] = shifted - lse


# ----------------------------------------------------------------------- Pallas wrappers
def conv_pool_relu_pallas(patches, w, b):
    """relu(maxpool2x2(conv) + bias) from phase-major im2col patches.

    patches: (4, M, K) bf16, w: (K, N) bf16, b: (1, N) f32 -> (M, N) bf16."""
    _, M, K = patches.shape
    N = w.shape[1]
    steps = _pick_steps(M, unit=16, target_rows=1024)
    tm = M // steps

    return pl.pallas_call(
        _conv_pool_relu_kernel,
        out_shape=jax.ShapeDtypeStruct((M, N), jnp.bfloat16),
        grid_spec=pltpu.PrefetchScalarGridSpec(
            num_scalar_prefetch=0,
            grid=(steps,),
            in_specs=[
                pl.BlockSpec((4, tm, K), lambda i: (0, i, 0)),   # patches: tiled rows
                pl.BlockSpec((K, N), lambda i: (0, 0)),          # weights: VMEM-resident
                pl.BlockSpec((1, N), lambda i: (0, 0)),          # bias: VMEM-resident
            ],
            out_specs=pl.BlockSpec((tm, N), lambda i: (i, 0)),
        ),
        compiler_params=pltpu.CompilerParams(
            dimension_semantics=("parallel",),
        ),
        cost_estimate=pl.CostEstimate(
            flops=2 * 4 * M * K * N,
            transcendentals=0,
            bytes_accessed=patches.size * 2 + w.size * 2 + b.size * 4 + M * N * 2,
        ),
    )(patches, w, b)


def mlp_head_pallas(x, w1, b1, w2, b2):
    """log_softmax(relu(x @ w1 + b1) @ w2 + b2, axis=1).

    x: (M, K) bf16, w1: (K, H) bf16, b1: (1, H) f32, w2: (H, C) bf16, b2: (1, C) f32."""
    M, K = x.shape
    H = w1.shape[1]
    C = w2.shape[1]
    steps = _pick_steps(M, unit=16, target_rows=512) if (M % 16 == 0 and M >= 32) else 1
    tm = M // steps

    return pl.pallas_call(
        _head_kernel,
        out_shape=jax.ShapeDtypeStruct((M, C), jnp.float32),
        grid_spec=pltpu.PrefetchScalarGridSpec(
            num_scalar_prefetch=0,
            grid=(steps,),
            in_specs=[
                pl.BlockSpec((tm, K), lambda i: (i, 0)),
                pl.BlockSpec((K, H), lambda i: (0, 0)),
                pl.BlockSpec((1, H), lambda i: (0, 0)),
                pl.BlockSpec((H, C), lambda i: (0, 0)),
                pl.BlockSpec((1, C), lambda i: (0, 0)),
            ],
            out_specs=pl.BlockSpec((tm, C), lambda i: (i, 0)),
        ),
        compiler_params=pltpu.CompilerParams(
            dimension_semantics=("parallel",),
        ),
        cost_estimate=pl.CostEstimate(
            flops=2 * M * K * H + 2 * M * H * C,
            transcendentals=M * C,
            bytes_accessed=x.size * 2 + (w1.size + w2.size) * 2
                           + (b1.size + b2.size) * 4 + M * C * 4,
        ),
    )(x, w1, b1, w2, b2)


# ------------------------------------------------------------------- parameter prep
def prepare_params(params):
    """One-time weight/bias casting, transposes and fc1 row reorder (hoisted out of
    the per-call wrappers).  PyTorch layouts in, kernel-ready layouts out."""
    w_c1, b_c1, w_c2, b_c2, w_f1, b_f1, w_f2, b_f2 = params
    wc1 = w_c1.reshape(w_c1.shape[0], -1).T.astype(jnp.bfloat16)      # (C_in*25, 10)
    bc1 = b_c1.reshape(1, -1).astype(jnp.float32)
    wc2 = w_c2.reshape(w_c2.shape[0], -1).T.astype(jnp.bfloat16)      # (250, 20)
    bc2 = b_c2.reshape(1, -1).astype(jnp.float32)
    # fc1 weight reordered so it consumes the (spatial, channel)-ordered flatten of
    # the conv2 kernel output directly (PyTorch flattens NCHW: feature = c*16 + s).
    out_f, in_f = w_f1.shape
    n_ch = w_c2.shape[0]
    sp = in_f // n_ch
    wf1 = (w_f1.reshape(out_f, n_ch, sp).transpose(0, 2, 1)
           .reshape(out_f, in_f).T.astype(jnp.bfloat16))              # (320, 50) rows=(s,c)
    bf1 = b_f1.reshape(1, -1).astype(jnp.float32)
    wf2 = w_f2.T.astype(jnp.bfloat16)                                 # (50, num_classes)
    bf2 = b_f2.reshape(1, -1).astype(jnp.float32)
    return (wc1, bc1, wc2, bc2, wf1, bf1, wf2, bf2)


# ----------------------------------------------------------------------- full forward
def cnn_mnist_forward(x_nchw, prepared):
    wc1, bc1, wc2, bc2, wf1, bf1, wf2, bf2 = prepared
    B = x_nchw.shape[0]
    x = jnp.transpose(x_nchw, (0, 2, 3, 1)).astype(jnp.bfloat16)      # NHWC bf16

    # conv1 + bias + 2x2 max-pool + ReLU, fused in one GEMM kernel.
    p1 = _im2col_pooled(x, 5, 5)                                      # (4, B*144, C*25)
    n1 = wc1.shape[1]
    y1 = conv_pool_relu_pallas(p1, wc1, bc1)                          # (B*144, 10) bf16
    ph1 = (x.shape[1] - 4) // 2
    pw1 = (x.shape[2] - 4) // 2
    y1 = y1.reshape(B, ph1, pw1, n1)                                  # (B, 12, 12, 10)

    # conv2 + bias + pool + ReLU.  TODO(synk): Dropout2d identity at inference.
    p2 = _im2col_pooled(y1, 5, 5)                                     # (4, B*16, 250)
    y2 = conv_pool_relu_pallas(p2, wc2, bc2)                          # (B*16, 20) bf16

    # Flatten in (spatial, channel) order; wf1 rows were reordered to match the
    # PyTorch NCHW flatten, so no transpose is needed here.
    feat = y2.reshape(B, -1)                                          # (B, 320) bf16

    # fused fc1 + ReLU + fc2 + log_softmax head.
    return mlp_head_pallas(feat, wf1, bf1, wf2, bf2)                  # (B, classes) f32


# -------------------------------------------------------------------- pure-JAX reference
def _im2col_ref(x_nhwc, kh, kw):
    B, H, W, C = x_nhwc.shape
    OH, OW = H - kh + 1, W - kw + 1
    patches = []
    for i in range(kh):
        for j in range(kw):
            patches.append(x_nhwc[:, i:i + OH, j:j + OW, :])
    p = jnp.stack(patches, axis=3)                                    # (B, OH, OW, kh*kw, C)
    p = jnp.transpose(p, (0, 1, 2, 4, 3))                             # (B, OH, OW, C, kh*kw)
    return p.reshape(B, OH, OW, C * kh * kw)


def _maxpool2x2_ref(x_nhwc):
    B, H, W, C = x_nhwc.shape
    x = x_nhwc.reshape(B, H // 2, 2, W // 2, 2, C)
    return jnp.max(x, axis=(2, 4))


def _reference_forward(x_nchw, params):
    w_c1, b_c1, w_c2, b_c2, w_f1, b_f1, w_f2, b_f2 = params
    x = jnp.transpose(x_nchw, (0, 2, 3, 1)).astype(jnp.float32)

    def conv(x_nhwc, w, b):
        p = _im2col_ref(x_nhwc, w.shape[2], w.shape[3])
        Bc, OH, OW, K = p.shape
        y = p.reshape(Bc * OH * OW, K) @ w.reshape(w.shape[0], -1).T + b
        return y.reshape(Bc, OH, OW, w.shape[0])

    y = jnp.maximum(_maxpool2x2_ref(conv(x, w_c1, b_c1)), 0.0)
    z = jnp.maximum(_maxpool2x2_ref(conv(y, w_c2, b_c2)), 0.0)
    feat = jnp.transpose(z, (0, 3, 1, 2)).reshape(z.shape[0], -1)
    h = jnp.maximum(feat @ w_f1.T + b_f1, 0.0)
    logits = h @ w_f2.T + b_f2
    return jax.nn.log_softmax(logits, axis=1)


# ----------------------------------------------------------------------------- params
def _init_uniform(key, shape, fan_in):
    bound = 1.0 / jnp.sqrt(float(fan_in))
    return jax.random.uniform(key, shape, jnp.float32, -bound, bound)


def init_params(key, num_channels, num_classes):
    ks = jax.random.split(key, 8)
    w_c1 = _init_uniform(ks[0], (10, num_channels, 5, 5), num_channels * 25)
    b_c1 = _init_uniform(ks[1], (10,), num_channels * 25)
    w_c2 = _init_uniform(ks[2], (20, 10, 5, 5), 10 * 25)
    b_c2 = _init_uniform(ks[3], (20,), 10 * 25)
    w_f1 = _init_uniform(ks[4], (50, 320), 320)
    b_f1 = _init_uniform(ks[5], (50,), 320)
    w_f2 = _init_uniform(ks[6], (num_classes, 50), 50)
    b_f2 = _init_uniform(ks[7], (num_classes,), 50)
    return (w_c1, b_c1, w_c2, b_c2, w_f1, b_f1, w_f2, b_f2)


if __name__ == "__main__":
    key = jax.random.PRNGKey(0)
    k_x, k_p = jax.random.split(key)

    # Shapes implied by the module: fc1 expects 320 = 20*4*4 -> 28x28 input (MNIST).
    B, C_in, Hs, Ws = 2, 1, 28, 28
    num_classes = 10

    x = jax.random.normal(k_x, (B, C_in, Hs, Ws), jnp.float32)
    params = init_params(k_p, C_in, num_classes)
    prepared = prepare_params(params)          # hoisted one-time weight prep

    fwd = jax.jit(cnn_mnist_forward)
    out = jax.block_until_ready(fwd(x, prepared))

    # Sanity: shape, valid log-probabilities, and agreement with a pure-JAX f32 reference.
    assert out.shape == (B, num_classes)
    probs_sum = jnp.sum(jnp.exp(out), axis=1)
    assert jnp.allclose(probs_sum, 1.0, atol=1e-3), probs_sum

    ref = _reference_forward(x, params)
    max_diff = float(jnp.max(jnp.abs(out - ref)))
    # bf16 MXU inputs (vs. PyTorch f32) -> ~1e-2 level error is an intentional trade.
    assert max_diff < 0.1, f"kernel vs reference max |diff| = {max_diff}"

    print("KERNEL_OK")
</pallas_src>

<mosaic_0001>
module attributes {stable_mosaic.version = 11 : i64} {
  func.func @_conv_pool_relu_kernel(%arg0: i32, %arg1: memref<4x144x25xbf16, #tpu.memory_space<vmem>>, %arg2: memref<25x10xbf16, #tpu.memory_space<vmem>>, %arg3: memref<1x10xf32, #tpu.memory_space<vmem>>, %arg4: memref<144x10xbf16, #tpu.memory_space<vmem>>) attributes {dimension_semantics = [#tpu.dimension_semantics<parallel>], iteration_bounds = array<i64: 2>, scalar_prefetch = 0 : i64, scratch_operands = 0 : i64, tpu.core_type = #tpu.core_type<tc>, window_params = [{transform_indices = @transform_0, window_bounds = array<i64: 4, 144, 25>}, {pipeline_mode = #tpu.pipeline_mode<synchronous>, transform_indices = @transform_1, window_bounds = array<i64: 25, 10>}, {pipeline_mode = #tpu.pipeline_mode<synchronous>, transform_indices = @transform_2, window_bounds = array<i64: 1, 10>}, {transform_indices = @transform_3, window_bounds = array<i64: 144, 10>}]} {
    %c0 = arith.constant 0 : index
    %c0_0 = arith.constant 0 : index
    %0 = vector.load %arg2[%c0, %c0_0] : memref<25x10xbf16, #tpu.memory_space<vmem>>, vector<25x10xbf16>
    %c0_1 = arith.constant 0 : index
    %c0_2 = arith.constant 0 : index
    %c0_3 = arith.constant 0 : index
    %1 = vector.load %arg1[%c0_1, %c0_2, %c0_3] : memref<4x144x25xbf16, #tpu.memory_space<vmem>>, vector<1x144x25xbf16>
    %2 = vector.shape_cast %1 : vector<1x144x25xbf16> to vector<144x25xbf16>
    %cst = arith.constant dense<0.000000e+00> : vector<144x10xf32>
    %3 = tpu.matmul %2, %0, %cst {dimension_numbers = #tpu.dot_dimension_numbers<[1], [0], [0], [1], [0, 0, 1, 1], [], []>} : vector<144x25xbf16>, vector<25x10xbf16>, vector<144x10xf32> -> vector<144x10xf32>
    %c1 = arith.constant 1 : index
    %c0_4 = arith.constant 0 : index
    %c0_5 = arith.constant 0 : index
    %4 = vector.load %arg1[%c1, %c0_4, %c0_5] : memref<4x144x25xbf16, #tpu.memory_space<vmem>>, vector<1x144x25xbf16>
    %5 = vector.shape_cast %4 : vector<1x144x25xbf16> to vector<144x25xbf16>
    %cst_6 = arith.constant dense<0.000000e+00> : vector<144x10xf32>
    %6 = tpu.matmul %5, %0, %cst_6 {dimension_numbers = #tpu.dot_dimension_numbers<[1], [0], [0], [1], [0, 0, 1, 1], [], []>} : vector<144x25xbf16>, vector<25x10xbf16>, vector<144x10xf32> -> vector<144x10xf32>
    %c2 = arith.constant 2 : index
    %c0_7 = arith.constant 0 : index
    %c0_8 = arith.constant 0 : index
    %7 = vector.load %arg1[%c2, %c0_7, %c0_8] : memref<4x144x25xbf16, #tpu.memory_space<vmem>>, vector<1x144x25xbf16>
    %8 = vector.shape_cast %7 : vector<1x144x25xbf16> to vector<144x25xbf16>
    %cst_9 = arith.constant dense<0.000000e+00> : vector<144x10xf32>
    %9 = tpu.matmul %8, %0, %cst_9 {dimension_numbers = #tpu.dot_dimension_numbers<[1], [0], [0], [1], [0, 0, 1, 1], [], []>} : vector<144x25xbf16>, vector<25x10xbf16>, vector<144x10xf32> -> vector<144x10xf32>
    %c3 = arith.constant 3 : index
    %c0_10 = arith.constant 0 : index
    %c0_11 = arith.constant 0 : index
    %10 = vector.load %arg1[%c3, %c0_10, %c0_11] : memref<4x144x25xbf16, #tpu.memory_space<vmem>>, vector<1x144x25xbf16>
    %11 = vector.shape_cast %10 : vector<1x144x25xbf16> to vector<144x25xbf16>
    %cst_12 = arith.constant dense<0.000000e+00> : vector<144x10xf32>
    %12 = tpu.matmul %11, %0, %cst_12 {dimension_numbers = #tpu.dot_dimension_numbers<[1], [0], [0], [1], [0, 0, 1, 1], [], []>} : vector<144x25xbf16>, vector<25x10xbf16>, vector<144x10xf32> -> vector<144x10xf32>
    %13 = arith.maximumf %3, %6 : vector<144x10xf32>
    %14 = arith.maximumf %9, %12 : vector<144x10xf32>
    %15 = arith.maximumf %13, %14 : vector<144x10xf32>
    %c0_13 = arith.constant 0 : index
    %c0_14 = arith.constant 0 : index
    %16 = vector.load %arg3[%c0_13, %c0_14] : memref<1x10xf32, #tpu.memory_space<vmem>>, vector<1x10xf32>
    %17 = vector.broadcast %16 : vector<1x10xf32> to vector<144x10xf32>
    %18 = arith.addf %15, %17 : vector<144x10xf32>
    %cst_15 = arith.constant 0.000000e+00 : f32
    %19 = vector.broadcast %cst_15 : f32 to vector<144x10xf32>
    %20 = arith.maximumf %18, %19 : vector<144x10xf32>
    %21 = arith.truncf %20 : vector<144x10xf32> to vector<144x10xbf16>
    %c0_16 = arith.constant 0 : index
    %c0_17 = arith.constant 0 : index
    %22 = vector.load %arg4[%c0_16, %c0_17] : memref<144x10xbf16, #tpu.memory_space<vmem>>, vector<144x10xbf16>
    tpu.vector_store %arg4[%c0_16, %c0_17], %21 {strides = array<i32>} : memref<144x10xbf16, #tpu.memory_space<vmem>>, vector<144x10xbf16>,
    return
  }
  func.func @transform_0(%arg0: i32) -> (i32, i32, i32) {
    %c0_i32 = arith.constant 0 : i32
    %c0_i32_0 = arith.constant 0 : i32
    %c0_i32_1 = arith.constant 0 : i32
    return %c0_i32, %arg0, %c0_i32_0 : i32, i32, i32
  }
  func.func @transform_1(%arg0: i32) -> (i32, i32) {
    %c0_i32 = arith.constant 0 : i32
    %c0_i32_0 = arith.constant 0 : i32
    %c0_i32_1 = arith.constant 0 : i32
    return %c0_i32, %c0_i32_0 : i32, i32
  }
  func.func @transform_2(%arg0: i32) -> (i32, i32) {
    %c0_i32 = arith.constant 0 : i32
    %c0_i32_0 = arith.constant 0 : i32
    %c0_i32_1 = arith.constant 0 : i32
    return %c0_i32, %c0_i32_0 : i32, i32
  }
  func.func @transform_3(%arg0: i32) -> (i32, i32) {
    %c0_i32 = arith.constant 0 : i32
    %c0_i32_0 = arith.constant 0 : i32
    return %arg0, %c0_i32 : i32, i32
  }
}

module attributes {stable_mosaic.version = 11 : i64} {
  func.func @_conv_pool_relu_kernel(%arg0: i32, %arg1: memref<4x16x250xbf16, #tpu.memory_space<vmem>>, %arg2: memref<250x20xbf16, #tpu.memory_space<vmem>>, %arg3: memref<1x20xf32, #tpu.memory_space<vmem>>, %arg4: memref<16x20xbf16, #tpu.memory_space<vmem>>) attributes {dimension_semantics = [#tpu.dimension_semantics<parallel>], iteration_bounds = array<i64: 2>, scalar_prefetch = 0 : i64, scratch_operands = 0 : i64, tpu.core_type = #tpu.core_type<tc>, window_params = [{transform_indices = @transform_0, window_bounds = array<i64: 4, 16, 250>}, {pipeline_mode = #tpu.pipeline_mode<synchronous>, transform_indices = @transform_1, window_bounds = array<i64: 250, 20>}, {pipeline_mode = #tpu.pipeline_mode<synchronous>, transform_indices = @transform_2, window_bounds = array<i64: 1, 20>}, {transform_indices = @transform_3, window_bounds = array<i64: 16, 20>}]} {
    %c0 = arith.constant 0 : index
    %c0_0 = arith.constant 0 : index
    %0 = vector.load %arg2[%c0, %c0_0] : memref<250x20xbf16, #tpu.memory_space<vmem>>, vector<250x20xbf16>
    %c0_1 = arith.constant 0 : index
    %c0_2 = arith.constant 0 : index
    %c0_3 = arith.constant 0 : index
    %1 = vector.load %arg1[%c0_1, %c0_2, %c0_3] : memref<4x16x250xbf16, #tpu.memory_space<vmem>>, vector<1x16x250xbf16>
    %2 = vector.shape_cast %1 : vector<1x16x250xbf16> to vector<16x250xbf16>
    %cst = arith.constant dense<0.000000e+00> : vector<16x20xf32>
    %3 = tpu.matmul %2, %0, %cst {dimension_numbers = #tpu.dot_dimension_numbers<[1], [0], [0], [1], [0, 0, 1, 1], [], []>} : vector<16x250xbf16>, vector<250x20xbf16>, vector<16x20xf32> -> vector<16x20xf32>
    %c1 = arith.constant 1 : index
    %c0_4 = arith.constant 0 : index
    %c0_5 = arith.constant 0 : index
    %4 = vector.load %arg1[%c1, %c0_4, %c0_5] : memref<4x16x250xbf16, #tpu.memory_space<vmem>>, vector<1x16x250xbf16>
    %5 = vector.shape_cast %4 : vector<1x16x250xbf16> to vector<16x250xbf16>
    %cst_6 = arith.constant dense<0.000000e+00> : vector<16x20xf32>
    %6 = tpu.matmul %5, %0, %cst_6 {dimension_numbers = #tpu.dot_dimension_numbers<[1], [0], [0], [1], [0, 0, 1, 1], [], []>} : vector<16x250xbf16>, vector<250x20xbf16>, vector<16x20xf32> -> vector<16x20xf32>
    %c2 = arith.constant 2 : index
    %c0_7 = arith.constant 0 : index
    %c0_8 = arith.constant 0 : index
    %7 = vector.load %arg1[%c2, %c0_7, %c0_8] : memref<4x16x250xbf16, #tpu.memory_space<vmem>>, vector<1x16x250xbf16>
    %8 = vector.shape_cast %7 : vector<1x16x250xbf16> to vector<16x250xbf16>
    %cst_9 = arith.constant dense<0.000000e+00> : vector<16x20xf32>
    %9 = tpu.matmul %8, %0, %cst_9 {dimension_numbers = #tpu.dot_dimension_numbers<[1], [0], [0], [1], [0, 0, 1, 1], [], []>} : vector<16x250xbf16>, vector<250x20xbf16>, vector<16x20xf32> -> vector<16x20xf32>
    %c3 = arith.constant 3 : index
    %c0_10 = arith.constant 0 : index
    %c0_11 = arith.constant 0 : index
    %10 = vector.load %arg1[%c3, %c0_10, %c0_11] : memref<4x16x250xbf16, #tpu.memory_space<vmem>>, vector<1x16x250xbf16>
    %11 = vector.shape_cast %10 : vector<1x16x250xbf16> to vector<16x250xbf16>
    %cst_12 = arith.constant dense<0.000000e+00> : vector<16x20xf32>
    %12 = tpu.matmul %11, %0, %cst_12 {dimension_numbers = #tpu.dot_dimension_numbers<[1], [0], [0], [1], [0, 0, 1, 1], [], []>} : vector<16x250xbf16>, vector<250x20xbf16>, vector<16x20xf32> -> vector<16x20xf32>
    %13 = arith.maximumf %3, %6 : vector<16x20xf32>
    %14 = arith.maximumf %9, %12 : vector<16x20xf32>
    %15 = arith.maximumf %13, %14 : vector<16x20xf32>
    %c0_13 = arith.constant 0 : index
    %c0_14 = arith.constant 0 : index
    %16 = vector.load %arg3[%c0_13, %c0_14] : memref<1x20xf32, #tpu.memory_space<vmem>>, vector<1x20xf32>
    %17 = vector.broadcast %16 : vector<1x20xf32> to vector<16x20xf32>
    %18 = arith.addf %15, %17 : vector<16x20xf32>
    %cst_15 = arith.constant 0.000000e+00 : f32
    %19 = vector.broadcast %cst_15 : f32 to vector<16x20xf32>
    %20 = arith.maximumf %18, %19 : vector<16x20xf32>
    %21 = arith.truncf %20 : vector<16x20xf32> to vector<16x20xbf16>
    %c0_16 = arith.constant 0 : index
    %c0_17 = arith.constant 0 : index
    %22 = vector.load %arg4[%c0_16, %c0_17] : memref<16x20xbf16, #tpu.memory_space<vmem>>, vector<16x20xbf16>
    tpu.vector_store %arg4[%c0_16, %c0_17], %21 {strides = array<i32>} : memref<16x20xbf16, #tpu.memory_space<vmem>>, vector<16x20xbf16>,
    return
  }
  func.func @transform_0(%arg0: i32) -> (i32, i32, i32) {
    %c0_i32 = arith.constant 0 : i32
    %c0_i32_0 = arith.constant 0 : i32
    %c0_i32_1 = arith.constant 0 : i32
    return %c0_i32, %arg0, %c0_i32_0 : i32, i32, i32
  }
  func.func @transform_1(%arg0: i32) -> (i32, i32) {
    %c0_i32 = arith.constant 0 : i32
    %c0_i32_0 = arith.constant 0 : i32
    %c0_i32_1 = arith.constant 0 : i32
    return %c0_i32, %c0_i32_0 : i32, i32
  }
  func.func @transform_2(%arg0: i32) -> (i32, i32) {
    %c0_i32 = arith.constant 0 : i32
    %c0_i32_0 = arith.constant 0 : i32
    %c0_i32_1 = arith.constant 0 : i32
    return %c0_i32, %c0_i32_0 : i32, i32
  }
  func.func @transform_3(%arg0: i32) -> (i32, i32) {
    %c0_i32 = arith.constant 0 : i32
    %c0_i32_0 = arith.constant 0 : i32
    return %arg0, %c0_i32 : i32, i32
  }
}

module attributes {stable_mosaic.version = 11 : i64} {
  func.func @_head_kernel(%arg0: i32, %arg1: memref<2x320xbf16, #tpu.memory_space<vmem>>, %arg2: memref<320x50xbf16, #tpu.memory_space<vmem>>, %arg3: memref<1x50xf32, #tpu.memory_space<vmem>>, %arg4: memref<50x10xbf16, #tpu.memory_space<vmem>>, %arg5: memref<1x10xf32, #tpu.memory_space<vmem>>, %arg6: memref<2x10xf32, #tpu.memory_space<vmem>>) attributes {dimension_semantics = [#tpu.dimension_semantics<parallel>], iteration_bounds = array<i64: 1>, scalar_prefetch = 0 : i64, scratch_operands = 0 : i64, tpu.core_type = #tpu.core_type<tc>, window_params = [{transform_indices = @transform_0, window_bounds = array<i64: 2, 320>}, {pipeline_mode = #tpu.pipeline_mode<synchronous>, transform_indices = @transform_1, window_bounds = array<i64: 320, 50>}, {pipeline_mode = #tpu.pipeline_mode<synchronous>, transform_indices = @transform_2, window_bounds = array<i64: 1, 50>}, {pipeline_mode = #tpu.pipeline_mode<synchronous>, transform_indices = @transform_3, window_bounds = array<i64: 50, 10>}, {pipeline_mode = #tpu.pipeline_mode<synchronous>, transform_indices = @transform_4, window_bounds = array<i64: 1, 10>}, {transform_indices = @transform_5, window_bounds = array<i64: 2, 10>}]} {
    %c0 = arith.constant 0 : index
    %c0_0 = arith.constant 0 : index
    %0 = vector.load %arg1[%c0, %c0_0] : memref<2x320xbf16, #tpu.memory_space<vmem>>, vector<2x320xbf16>
    %c0_1 = arith.constant 0 : index
    %c0_2 = arith.constant 0 : index
    %1 = vector.load %arg2[%c0_1, %c0_2] : memref<320x50xbf16, #tpu.memory_space<vmem>>, vector<320x50xbf16>
    %cst = arith.constant dense<0.000000e+00> : vector<2x50xf32>
    %2 = tpu.matmul %0, %1, %cst {dimension_numbers = #tpu.dot_dimension_numbers<[1], [0], [0], [1], [0, 0, 1, 1], [], []>} : vector<2x320xbf16>, vector<320x50xbf16>, vector<2x50xf32> -> vector<2x50xf32>
    %c0_3 = arith.constant 0 : index
    %c0_4 = arith.constant 0 : index
    %3 = vector.load %arg3[%c0_3, %c0_4] : memref<1x50xf32, #tpu.memory_space<vmem>>, vector<1x50xf32>
    %4 = vector.broadcast %3 : vector<1x50xf32> to vector<2x50xf32>
    %5 = arith.addf %2, %4 : vector<2x50xf32>
    %cst_5 = arith.constant 0.000000e+00 : f32
    %6 = vector.broadcast %cst_5 : f32 to vector<2x50xf32>
    %7 = arith.maximumf %5, %6 : vector<2x50xf32>
    %8 = arith.truncf %7 : vector<2x50xf32> to vector<2x50xbf16>
    %c0_6 = arith.constant 0 : index
    %c0_7 = arith.constant 0 : index
    %9 = vector.load %arg4[%c0_6, %c0_7] : memref<50x10xbf16, #tpu.memory_space<vmem>>, vector<50x10xbf16>
    %cst_8 = arith.constant dense<0.000000e+00> : vector<2x10xf32>
    %10 = tpu.matmul %8, %9, %cst_8 {dimension_numbers = #tpu.dot_dimension_numbers<[1], [0], [0], [1], [0, 0, 1, 1], [], []>} : vector<2x50xbf16>, vector<50x10xbf16>, vector<2x10xf32> -> vector<2x10xf32>
    %c0_9 = arith.constant 0 : index
    %c0_10 = arith.constant 0 : index
    %11 = vector.load %arg5[%c0_9, %c0_10] : memref<1x10xf32, #tpu.memory_space<vmem>>, vector<1x10xf32>
    %12 = vector.broadcast %11 : vector<1x10xf32> to vector<2x10xf32>
    %13 = arith.addf %10, %12 : vector<2x10xf32>
    %cst_11 = arith.constant dense<0xFF800000> : vector<2xf32>
    %14 = vector.multi_reduction <maximumf>, %13, %cst_11 [1] : vector<2x10xf32> to vector<2xf32>
    %15 = vector.shape_cast %14 : vector<2xf32> to vector<2x1xf32>
    %16 = vector.broadcast %15 : vector<2x1xf32> to vector<2x10xf32>
    %17 = arith.subf %13, %16 : vector<2x10xf32>
    %18 = math.exp %17 : vector<2x10xf32>
    %cst_12 = arith.constant dense<0.000000e+00> : vector<2xf32>
    %19 = vector.multi_reduction <add>, %18, %cst_12 [1] : vector<2x10xf32> to vector<2xf32>
    %20 = vector.shape_cast %19 : vector<2xf32> to vector<2x1xf32>
    %21 = math.log %20 : vector<2x1xf32>
    %22 = vector.broadcast %21 : vector<2x1xf32> to vector<2x10xf32>
    %23 = arith.subf %17, %22 : vector<2x10xf32>
    %c0_13 = arith.constant 0 : index
    %c0_14 = arith.constant 0 : index
    %24 = vector.load %arg6[%c0_13, %c0_14] : memref<2x10xf32, #tpu.memory_space<vmem>>, vector<2x10xf32>
    tpu.vector_store %arg6[%c0_13, %c0_14], %23 {strides = array<i32>} : memref<2x10xf32, #tpu.memory_space<vmem>>, vector<2x10xf32>,
    return
  }
  func.func @transform_0(%arg0: i32) -> (i32, i32) {
    %c0_i32 = arith.constant 0 : i32
    %c0_i32_0 = arith.constant 0 : i32
    return %arg0, %c0_i32 : i32, i32
  }
  func.func @transform_1(%arg0: i32) -> (i32, i32) {
    %c0_i32 = arith.constant 0 : i32
    %c0_i32_0 = arith.constant 0 : i32
    %c0_i32_1 = arith.constant 0 : i32
    return %c0_i32, %c0_i32_0 : i32, i32
  }
  func.func @transform_2(%arg0: i32) -> (i32, i32) {
    %c0_i32 = arith.constant 0 : i32
    %c0_i32_0 = arith.constant 0 : i32
    %c0_i32_1 = arith.constant 0 : i32
    return %c0_i32, %c0_i32_0 : i32, i32
  }
  func.func @transform_3(%arg0: i32) -> (i32, i32) {
    %c0_i32 = arith.constant 0 : i32
    %c0_i32_0 = arith.constant 0 : i32
    %c0_i32_1 = arith.constant 0 : i32
    return %c0_i32, %c0_i32_0 : i32, i32
  }
  func.func @transform_4(%arg0: i32) -> (i32, i32) {
    %c0_i32 = arith.constant 0 : i32
    %c0_i32_0 = arith.constant 0 : i32
    %c0_i32_1 = arith.constant 0 : i32
    return %c0_i32, %c0_i32_0 : i32, i32
  }
  func.func @transform_5(%arg0: i32) -> (i32, i32) {
    %c0_i32 = arith.constant 0 : i32
    %c0_i32_0 = arith.constant 0 : i32
    return %arg0, %c0_i32 : i32, i32
  }
}

</mosaic_0001>

<llo_original>
// kernel: cnn_mnist_forward.3
$region0: #{cnn_mnist_forward.3}
  #allocation0 [shape = 'u32[]', space=smem, size = 0x4, offset = 0x4, fixed_abs, tag = 'smem constant byte address 0x4 - core index']
  #allocation1 [shape = 'u32[144,128]{1,0:T(1,128)}', space=vmem, size = 0x12000, scoped, tag = 'internal scratch']
  %s0 = inlined_call_operand.vmem [shape: bf16[4,288,25], index: 0, kind: input, shape index: {}]
  %s1 = inlined_call_operand.vmem [shape: bf16[25,10], index: 1, kind: input, shape index: {}]
  %s2 = inlined_call_operand.vmem [shape: f32[1,10], index: 2, kind: input, shape index: {}]
  %s3 = inlined_call_operand.vmem [shape: bf16[288,10], index: 3, kind: output, shape index: {}]
  %s4 = sld [smem:[#allocation0]]
  $region86: #{cnn_mnist_forward.3} parent=0
    _
  %s6 = ssub.s32 1, %s4
  %s7 = scalar_select 0, %s6, %s4
  $region1: #{cnn_mnist_forward.3} parent=0
    #allocation2 [shape = 'u8[294912]{0}', space=vmem, size = 0x48000, scoped, tag = 'input window, operand 0']
    loop: start=0, step=1, limit=4
    $region2: #{cnn_mnist_forward.3} parent=1 // loop_pre_header
      _
    $region3: #{cnn_mnist_forward.3} parent=1 // loop_header
      %s9 = sphi 0, %s13
      %p10 = scmp.ge.s32.totalorder %s9, 4
      %s19 = sphi 0, %s21
      %s22 = sphi 0, %s19
      %s23 = sphi 0, %s22
      %s39 = sphi 0, %s23
      %s43 = sphi 0, %s43
      %s45 = sphi 0, %s43
      %s46 = sphi 0, %s45
      %s60 = sphi 0, %s46
      %s64 = sphi 0, %s64
      %s66 = sphi 0, %s64
      %s67 = sphi 0, %s66
      %s81 = sphi 0, %s67
      %s87 = sphi 0, %s89
      %s90 = sphi 0, %s87
      %s91 = sphi 0, %s90
      %s107 = sphi 0, %s91
    $region4: #{cnn_mnist_forward.3} parent=1 // loop_header_branch
      %12 = sbr.rel (%p10) target = $region8
    $region5: #{cnn_mnist_forward.3} parent=1 // loop_body
      %s14 = ssub.s32 %s9, 1
      %s15 = ssub.s32 %s9, 2
      %s16 = sadd.s32 %s9, 1
      %s17 = ssub.s32 %s9, %s16
      %p18 = scmp.eq.s32.totalorder %s17, 0
      %s20 = sadd.s32 %s19, 1
      %s21 = scalar_select %p18, %s19, %s20
      %p24 = pneg %p18
      %p25 = scmp.eq.s32.totalorder %s9, 1
      %p26 = por %p24, %p25
      %p27 = scmp.ne.s32.totalorder %s19, %s22
      %p28 = scmp.eq.s32.totalorder %s9, 0
      %p29 = por %p27, %p28
      %p30 = scmp.ne.s32.totalorder %s19, %s22
      %p31 = scmp.eq.s32.totalorder %s14, 1
      %p32 = por %p30, %p31
      %p33 = scmp.ne.s32.totalorder %s22, %s23
      %p34 = scmp.eq.s32.totalorder %s14, 0
      %p35 = por %p33, %p34
      %p36 = scmp.ne.s32.totalorder %s22, %s23
      %p37 = scmp.eq.s32.totalorder %s15, 1
      %p38 = por %p36, %p37
      %p40 = scmp.ne.s32.totalorder %s23, %s39
      %p41 = scmp.eq.s32.totalorder %s15, 0
      %p42 = por %p40, %p41
      %s44 = sadd.s32 %s43, 1
      %p47 = scmp.eq.s32.totalorder %s9, 1
      %p48 = scmp.ne.s32.totalorder %s43, %s45
      %p49 = scmp.eq.s32.totalorder %s9, 0
      %p50 = por %p48, %p49
      %p51 = scmp.ne.s32.totalorder %s43, %s45
      %p52 = scmp.eq.s32.totalorder %s14, 1
      %p53 = por %p51, %p52
      %p54 = scmp.ne.s32.totalorder %s45, %s46
      %p55 = scmp.eq.s32.totalorder %s14, 0
      %p56 = por %p54, %p55
      %p57 = scmp.ne.s32.totalorder %s45, %s46
      %p58 = scmp.eq.s32.totalorder %s15, 1
      %p59 = por %p57, %p58
      %p61 = scmp.ne.s32.totalorder %s46, %s60
      %p62 = scmp.eq.s32.totalorder %s15, 0
      %p63 = por %p61, %p62
      %s65 = sadd.s32 %s64, 1
      %p68 = scmp.eq.s32.totalorder %s9, 1
      %p69 = scmp.ne.s32.totalorder %s64, %s66
      %p70 = scmp.eq.s32.totalorder %s9, 0
      %p71 = por %p69, %p70
      %p72 = scmp.ne.s32.totalorder %s64, %s66
      %p73 = scmp.eq.s32.totalorder %s14, 1
      %p74 = por %p72, %p73
      %p75 = scmp.ne.s32.totalorder %s66, %s67
      %p76 = scmp.eq.s32.totalorder %s14, 0
      %p77 = por %p75, %p76
      %p78 = scmp.ne.s32.totalorder %s66, %s67
      %p79 = scmp.eq.s32.totalorder %s15, 1
      %p80 = por %p78, %p79
      %p82 = scmp.ne.s32.totalorder %s67, %s81
      %p83 = scmp.eq.s32.totalorder %s15, 0
      %p84 = por %p82, %p83
      %s85 = ssub.s32 %s9, %s16
      %p86 = scmp.eq.s32.totalorder %s85, 0
      %s88 = sadd.s32 %s87, 1
      %s89 = scalar_select %p86, %s87, %s88
      %p92 = pneg %p86
      %p93 = scmp.eq.s32.totalorder %s9, 1
      %p94 = por %p92, %p93
      %p95 = scmp.ne.s32.totalorder %s87, %s90
      %p96 = scmp.eq.s32.totalorder %s9, 0
      %p97 = por %p95, %p96
      %p98 = scmp.ne.s32.totalorder %s87, %s90
      %p99 = scmp.eq.s32.totalorder %s14, 1
      %p100 = por %p98, %p99
      %p101 = scmp.ne.s32.totalorder %s90, %s91
      %p102 = scmp.eq.s32.totalorder %s14, 0
      %p103 = por %p101, %p102
      %p104 = scmp.ne.s32.totalorder %s90, %s91
      %p105 = scmp.eq.s32.totalorder %s15, 1
      %p106 = por %p104, %p105
      %p108 = scmp.ne.s32.totalorder %s91, %s107
      %p109 = scmp.eq.s32.totalorder %s15, 0
      %p110 = por %p108, %p109
      %p111 = scmp.le.s32.totalorder 1, %s9
      %p112 = scmp.lt.s32.totalorder %s9, 3
      %p113 = pnand %p111, %p112
      %p114 = pneg %p113
      // Predicated region
      $region9: #{cnn_mnist_forward.3} parent=5 // pred_check
        _
      $region10: #{cnn_mnist_forward.3} parent=5 // pred_check_branch
        %116 = sbr.rel (%p113) target = $region12
      $region11: #{cnn_mnist_forward.3} parent=5 // pred_region
        %s117 = ssub.s32 %s9, 1
        // Predicated region
        $region13: #{cnn_mnist_forward.3} parent=11 // pred_check
          %p118 = pneg %p56
        $region14: #{cnn_mnist_forward.3} parent=11 // pred_check_branch
          %120 = sbr.rel (%p118) target = $region16
        $region15: #{cnn_mnist_forward.3} parent=11 // pred_region
          _
        $region16: #{cnn_mnist_forward.3} parent=11 // pred_fallthru
          _
        // Predicated region
        $region17: #{cnn_mnist_forward.3} parent=11 // pred_check
          %p121 = pneg %p77
        $region18: #{cnn_mnist_forward.3} parent=11 // pred_check_branch
          %123 = sbr.rel (%p121) target = $region20
        $region19: #{cnn_mnist_forward.3} parent=11 // pred_region
          _
        $region20: #{cnn_mnist_forward.3} parent=11 // pred_fallthru
          _
      $region12: #{cnn_mnist_forward.3} parent=5 // pred_fallthru
        _
      %p124 = scmp.lt.s32.totalorder %s9, 2
      // Predicated region
      $region21: #{cnn_mnist_forward.3} parent=5 // pred_check
        %p125 = pneg %p124
      $region22: #{cnn_mnist_forward.3} parent=5 // pred_check_branch
        %127 = sbr.rel (%p125) target = $region24
      $region23: #{cnn_mnist_forward.3} parent=5 // pred_region
        // Predicated region
        $region25: #{cnn_mnist_forward.3} parent=23 // pred_check
          %p128 = pneg %p29
        $region26: #{cnn_mnist_forward.3} parent=23 // pred_check_branch
          %130 = sbr.rel (%p128) target = $region28
        $region27: #{cnn_mnist_forward.3} parent=23 // pred_region
          %s131 = sand.u32 %s19, 1
          %s132 = sand.u32 %s19, 1
          %s133 = smul.addr %s132, 288
          %s134 = scalar_lea.vmem [#allocation2], %s133
          %s135 = smul.u32 18, %s9
          %s136 = smul.addr %s135, 4
          %s137 = scalar_lea.vmem %s0, %s136
          // Predicated region
          $region29: #{cnn_mnist_forward.3} parent=27 // pred_check
            _
          $region30: #{cnn_mnist_forward.3} parent=27 // pred_check_branch
            %139 = sbr.rel (0) target = $region32
          $region31: #{cnn_mnist_forward.3} parent=27 // pred_region
            // Predicated region
            $region33: #{cnn_mnist_forward.3} parent=31 // pred_check
              _
            $region34: #{cnn_mnist_forward.3} parent=31 // pred_check_branch
              %141 = sbr.rel target = $region36
            $region35: #{cnn_mnist_forward.3} parent=31 // pred_region
              // Predicated region
              $region48: #{cnn_mnist_forward.3} parent=35 // pred_check
                _
              $region49: #{cnn_mnist_forward.3} parent=35 // pred_check_branch
                %298 = sbr.rel (0) target = $region51
              $region50: #{cnn_mnist_forward.3} parent=35 // pred_region
                loop: start=0, step=1, limit=1
                $region52: #{cnn_mnist_forward.3} parent=50 // loop_pre_header
                  _
                $region53: #{cnn_mnist_forward.3} parent=50 // loop_header
                  %s300 = sphi 0, %s304
                  %p301 = scmp.ge.s32.totalorder %s300, 1
                  %s305 = sphi %s137, %s137
                  %s306 = sphi %s134, %s134
                $region54: #{cnn_mnist_forward.3} parent=50 // loop_header_branch
                  %303 = sbr.rel (%p301) target = $region58
                $region55: #{cnn_mnist_forward.3} parent=50 // loop_body
                  _
                $region56: #{cnn_mnist_forward.3} parent=50 // loop_footer
                  %s304 = sadd.s32 1, %s300
                $region57: #{cnn_mnist_forward.3} parent=50 // loop_footer_branch
                  %299 = sbr.rel target = $region53
                $region58: #{cnn_mnist_forward.3} parent=50 // loop_exit
                  _
                loop: start=0, step=1, limit=1
                $region59: #{cnn_mnist_forward.3} parent=50 // loop_pre_header
                  _
                $region60: #{cnn_mnist_forward.3} parent=50 // loop_header
                  %s309 = sphi 0, %s313
                  %p310 = scmp.ge.s32.totalorder %s309, 1
                  %s314 = sphi %s137, %s137
                  %s315 = sphi %s134, %s134
                $region61: #{cnn_mnist_forward.3} parent=50 // loop_header_branch
                  %312 = sbr.rel (%p310) target = $region65
                $region62: #{cnn_mnist_forward.3} parent=50 // loop_body
                  %v316 = vld [vmem:[%s314] sm:$0xf]
                  %317 = vst [vmem:[%s315] sm:$0xf] %v316
                  %v318 = vld [vmem:[%s314 + $0x4] sm:$0xf]
                  %319 = vst [vmem:[%s315 + $0x4] sm:$0xf] %v318
                  %v320 = vld [vmem:[%s314 + $0x8] sm:$0xf]
                  %321 = vst [vmem:[%s315 + $0x8] sm:$0xf] %v320
                  %v322 = vld [vmem:[%s314 + $0xc] sm:$0xf]
                  %323 = vst [vmem:[%s315 + $0xc] sm:$0xf] %v322
                  %v324 = vld [vmem:[%s314 + $0x10] sm:$0xf]
                  %325 = vst [vmem:[%s315 + $0x10] sm:$0xf] %v324
                  %v326 = vld [vmem:[%s314 + $0x14] sm:$0xf]
                  %327 = vst [vmem:[%s315 + $0x14] sm:$0xf] %v326
                  %v328 = vld [vmem:[%s314 + $0x18] sm:$0xf]
                  %329 = vst [vmem:[%s315 + $0x18] sm:$0xf] %v328
                  %v330 = vld [vmem:[%s314 + $0x1c] sm:$0xf]
                  %331 = vst [vmem:[%s315 + $0x1c] sm:$0xf] %v330
                  %v332 = vld [vmem:[%s314 + $0x20] sm:$0xf]
                  %333 = vst [vmem:[%s315 + $0x20] sm:$0xf] %v332
                  %v334 = vld [vmem:[%s314 + $0x24] sm:$0xf]
                  %335 = vst [vmem:[%s315 + $0x24] sm:$0xf] %v334
                  %v336 = vld [vmem:[%s314 + $0x28] sm:$0xf]
                  %337 = vst [vmem:[%s315 + $0x28] sm:$0xf] %v336
                  %v338 = vld [vmem:[%s314 + $0x2c] sm:$0xf]
                  %339 = vst [vmem:[%s315 + $0x2c] sm:$0xf] %v338
                  %v340 = vld [vmem:[%s314 + $0x30] sm:$0xf]
                  %341 = vst [vmem:[%s315 + $0x30] sm:$0xf] %v340
                  %v342 = vld [vmem:[%s314 + $0x34] sm:$0xf]
                  %343 = vst [vmem:[%s315 + $0x34] sm:$0xf] %v342
                  %v344 = vld [vmem:[%s314 + $0x38] sm:$0xf]
                  %345 = vst [vmem:[%s315 + $0x38] sm:$0xf] %v344
                  %v346 = vld [vmem:[%s314 + $0x3c] sm:$0xf]
                  %347 = vst [vmem:[%s315 + $0x3c] sm:$0xf] %v346
                  %v348 = vld [vmem:[%s314 + $0x40] sm:$0xf]
                  %349 = vst [vmem:[%s315 + $0x40] sm:$0xf] %v348
                  %v350 = vld [vmem:[%s314 + $0x44] sm:$0xf]
                  %351 = vst [vmem:[%s315 + $0x44] sm:$0xf] %v350
                  %v352 = vld [vmem:[%s314 + $0x90] sm:$0xf]
                  %353 = vst [vmem:[%s315 + $0x48] sm:$0xf] %v352
                  %v354 = vld [vmem:[%s314 + $0x94] sm:$0xf]
                  %355 = vst [vmem:[%s315 + $0x4c] sm:$0xf] %v354
                  %v356 = vld [vmem:[%s314 + $0x98] sm:$0xf]
                  %357 = vst [vmem:[%s315 + $0x50] sm:$0xf] %v356
                  %v358 = vld [vmem:[%s314 + $0x9c] sm:$0xf]
                  %359 = vst [vmem:[%s315 + $0x54] sm:$0xf] %v358
                  %v360 = vld [vmem:[%s314 + $0xa0] sm:$0xf]
                  %361 = vst [vmem:[%s315 + $0x58] sm:$0xf] %v360
                  %v362 = vld [vmem:[%s314 + $0xa4] sm:$0xf]
                  %363 = vst [vmem:[%s315 + $0x5c] sm:$0xf] %v362
                  %v364 = vld [vmem:[%s314 + $0xa8] sm:$0xf]
                  %365 = vst [vmem:[%s315 + $0x60] sm:$0xf] %v364
                  %v366 = vld [vmem:[%s314 + $0xac] sm:$0xf]
                  %367 = vst [vmem:[%s315 + $0x64] sm:$0xf] %v366
                  %v368 = vld [vmem:[%s314 + $0xb0] sm:$0xf]
                  %369 = vst [vmem:[%s315 + $0x68] sm:$0xf] %v368
                  %v370 = vld [vmem:[%s314 + $0xb4] sm:$0xf]
                  %371 = vst [vmem:[%s315 + $0x6c] sm:$0xf] %v370
                  %v372 = vld [vmem:[%s314 + $0xb8] sm:$0xf]
                  %373 = vst [vmem:[%s315 + $0x70] sm:$0xf] %v372
                  %v374 = vld [vmem:[%s314 + $0xbc] sm:$0xf]
                  %375 = vst [vmem:[%s315 + $0x74] sm:$0xf] %v374
                  %v376 = vld [vmem:[%s314 + $0xc0] sm:$0xf]
                  %377 = vst [vmem:[%s315 + $0x78] sm:$0xf] %v376
                  %v378 = vld [vmem:[%s314 + $0xc4] sm:$0xf]
                  %379 = vst [vmem:[%s315 + $0x7c] sm:$0xf] %v378
                  %v380 = vld [vmem:[%s314 + $0xc8] sm:$0xf]
                  %381 = vst [vmem:[%s315 + $0x80] sm:$0xf] %v380
                  %v382 = vld [vmem:[%s314 + $0xcc] sm:$0xf]
                  %383 = vst [vmem:[%s315 + $0x84] sm:$0xf] %v382
                  %v384 = vld [vmem:[%s314 + $0xd0] sm:$0xf]
                  %385 = vst [vmem:[%s315 + $0x88] sm:$0xf] %v384
                  %v386 = vld [vmem:[%s314 + $0xd4] sm:$0xf]
                  %387 = vst [vmem:[%s315 + $0x8c] sm:$0xf] %v386
                  %v388 = vld [vmem:[%s314 + $0x120] sm:$0xf]
                  %389 = vst [vmem:[%s315 + $0x90] sm:$0xf] %v388
                  %v390 = vld [vmem:[%s314 + $0x124] sm:$0xf]
                  %391 = vst [vmem:[%s315 + $0x94] sm:$0xf] %v390
                  %v392 = vld [vmem:[%s314 + $0x128] sm:$0xf]
                  %393 = vst [vmem:[%s315 + $0x98] sm:$0xf] %v392
                  %v394 = vld [vmem:[%s314 + $0x12c] sm:$0xf]
                  %395 = vst [vmem:[%s315 + $0x9c] sm:$0xf] %v394
                  %v396 = vld [vmem:[%s314 + $0x130] sm:$0xf]
                  %397 = vst [vmem:[%s315 + $0xa0] sm:$0xf] %v396
                  %v398 = vld [vmem:[%s314 + $0x134] sm:$0xf]
                  %399 = vst [vmem:[%s315 + $0xa4] sm:$0xf] %v398
                  %v400 = vld [vmem:[%s314 + $0x138] sm:$0xf]
                  %401 = vst [vmem:[%s315 + $0xa8] sm:$0xf] %v400
                  %v402 = vld [vmem:[%s314 + $0x13c] sm:$0xf]
                  %403 = vst [vmem:[%s315 + $0xac] sm:$0xf] %v402
                  %v404 = vld [vmem:[%s314 + $0x140] sm:$0xf]
                  %405 = vst [vmem:[%s315 + $0xb0] sm:$0xf] %v404
                  %v406 = vld [vmem:[%s314 + $0x144] sm:$0xf]
                  %407 = vst [vmem:[%s315 + $0xb4] sm:$0xf] %v406
                  %v408 = vld [vmem:[%s314 + $0x148] sm:$0xf]
                  %409 = vst [vmem:[%s315 + $0xb8] sm:$0xf] %v408
                  %v410 = vld [vmem:[%s314 + $0x14c] sm:$0xf]
                  %411 = vst [vmem:[%s315 + $0xbc] sm:$0xf] %v410
                  %v412 = vld [vmem:[%s314 + $0x150] sm:$0xf]
                  %413 = vst [vmem:[%s315 + $0xc0] sm:$0xf] %v412
                  %v414 = vld [vmem:[%s314 + $0x154] sm:$0xf]
                  %415 = vst [vmem:[%s315 + $0xc4] sm:$0xf] %v414
                  %v416 = vld [vmem:[%s314 + $0x158] sm:$0xf]
                  %417 = vst [vmem:[%s315 + $0xc8] sm:$0xf] %v416
                  %v418 = vld [vmem:[%s314 + $0x15c] sm:$0xf]
                  %419 = vst [vmem:[%s315 + $0xcc] sm:$0xf] %v418
                  %v420 = vld [vmem:[%s314 + $0x160] sm:$0xf]
                  %421 = vst [vmem:[%s315 + $0xd0] sm:$0xf] %v420
                  %v422 = vld [vmem:[%s314 + $0x164] sm:$0xf]
                  %423 = vst [vmem:[%s315 + $0xd4] sm:$0xf] %v422
                  %v424 = vld [vmem:[%s314 + $0x1b0] sm:$0xf]
                  %425 = vst [vmem:[%s315 + $0xd8] sm:$0xf] %v424
                  %v426 = vld [vmem:[%s314 + $0x1b4] sm:$0xf]
                  %427 = vst [vmem:[%s315 + $0xdc] sm:$0xf] %v426
                  %v428 = vld [vmem:[%s314 + $0x1b8] sm:$0xf]
                  %429 = vst [vmem:[%s315 + $0xe0] sm:$0xf] %v428
                  %v430 = vld [vmem:[%s314 + $0x1bc] sm:$0xf]
                  %431 = vst [vmem:[%s315 + $0xe4] sm:$0xf] %v430
                  %v432 = vld [vmem:[%s314 + $0x1c0] sm:$0xf]
                  %433 = vst [vmem:[%s315 + $0xe8] sm:$0xf] %v432
                  %v434 = vld [vmem:[%s314 + $0x1c4] sm:$0xf]
                  %435 = vst [vmem:[%s315 + $0xec] sm:$0xf] %v434
                  %v436 = vld [vmem:[%s314 + $0x1c8] sm:$0xf]
                  %437 = vst [vmem:[%s315 + $0xf0] sm:$0xf] %v436
                  %v438 = vld [vmem:[%s314 + $0x1cc] sm:$0xf]
                  %439 = vst [vmem:[%s315 + $0xf4] sm:$0xf] %v438
                  %v440 = vld [vmem:[%s314 + $0x1d0] sm:$0xf]
                  %441 = vst [vmem:[%s315 + $0xf8] sm:$0xf] %v440
                  %v442 = vld [vmem:[%s314 + $0x1d4] sm:$0xf]
                  %443 = vst [vmem:[%s315 + $0xfc] sm:$0xf] %v442
                  %v444 = vld [vmem:[%s314 + $0x1d8] sm:$0xf]
                  %445 = vst [vmem:[%s315 + $0x100] sm:$0xf] %v444
                  %v446 = vld [vmem:[%s314 + $0x1dc] sm:$0xf]
                  %447 = vst [vmem:[%s315 + $0x104] sm:$0xf] %v446
                  %v448 = vld [vmem:[%s314 + $0x1e0] sm:$0xf]
                  %449 = vst [vmem:[%s315 + $0x108] sm:$0xf] %v448
                  %v450 = vld [vmem:[%s314 + $0x1e4] sm:$0xf]
                  %451 = vst [vmem:[%s315 + $0x10c] sm:$0xf] %v450
                  %v452 = vld [vmem:[%s314 + $0x1e8] sm:$0xf]
                  %453 = vst [vmem:[%s315 + $0x110] sm:$0xf] %v452
                  %v454 = vld [vmem:[%s314 + $0x1ec] sm:$0xf]
                  %455 = vst [vmem:[%s315 + $0x114] sm:$0xf] %v454
                  %v456 = vld [vmem:[%s314 + $0x1f0] sm:$0xf]
                  %457 = vst [vmem:[%s315 + $0x118] sm:$0xf] %v456
                  %v458 = vld [vmem:[%s314 + $0x1f4] sm:$0xf]
                  %459 = vst [vmem:[%s315 + $0x11c] sm:$0xf] %v458
                $region63: #{cnn_mnist_forward.3} parent=50 // loop_footer
                  %s313 = sadd.s32 1, %s309
                $region64: #{cnn_mnist_forward.3} parent=50 // loop_footer_branch
                  %308 = sbr.rel target = $region60
                $region65: #{cnn_mnist_forward.3} parent=50 // loop_exit
                  _
              $region51: #{cnn_mnist_forward.3} parent=35 // pred_fallthru
                _
            $region36: #{cnn_mnist_forward.3} parent=31 // pred_fallthru
              _
            // Predicated region
            $region37: #{cnn_mnist_forward.3} parent=31 // pred_check
              _
            $region38: #{cnn_mnist_forward.3} parent=31 // pred_check_branch
              %143 = sbr.rel (0) target = $region40
            $region39: #{cnn_mnist_forward.3} parent=31 // pred_region
              loop: start=0, step=1, limit=1
              $region41: #{cnn_mnist_forward.3} parent=39 // loop_pre_header
                _
              $region42: #{cnn_mnist_forward.3} parent=39 // loop_header
                %s146 = sphi 0, %s150
                %p147 = scmp.ge.s32.totalorder %s146, 1
                %s151 = sphi %s137, %s137
                %s152 = sphi %s134, %s134
              $region43: #{cnn_mnist_forward.3} parent=39 // loop_header_branch
                %149 = sbr.rel (%p147) target = $region47
              $region44: #{cnn_mnist_forward.3} parent=39 // loop_body
                %v153 = vld [vmem:[%s151] sm:$0xf]
                %154 = vst [vmem:[%s152] sm:$0xf] %v153
                %v155 = vld [vmem:[%s151 + $0x4] sm:$0xf]
                %156 = vst [vmem:[%s152 + $0x4] sm:$0xf] %v155
                %v157 = vld [vmem:[%s151 + $0x8] sm:$0xf]
                %158 = vst [vmem:[%s152 + $0x8] sm:$0xf] %v157
                %v159 = vld [vmem:[%s151 + $0xc] sm:$0xf]
                %160 = vst [vmem:[%s152 + $0xc] sm:$0xf] %v159
                %v161 = vld [vmem:[%s151 + $0x10] sm:$0xf]
                %162 = vst [vmem:[%s152 + $0x10] sm:$0xf] %v161
                %v163 = vld [vmem:[%s151 + $0x14] sm:$0xf]
                %164 = vst [vmem:[%s152 + $0x14] sm:$0xf] %v163
                %v165 = vld [vmem:[%s151 + $0x18] sm:$0xf]
                %166 = vst [vmem:[%s152 + $0x18] sm:$0xf] %v165
                %v167 = vld [vmem:[%s151 + $0x1c] sm:$0xf]
                %168 = vst [vmem:[%s152 + $0x1c] sm:$0xf] %v167
                %v169 = vld [vmem:[%s151 + $0x20] sm:$0xf]
                %170 = vst [vmem:[%s152 + $0x20] sm:$0xf] %v169
                %v171 = vld [vmem:[%s151 + $0x24] sm:$0xf]
                %172 = vst [vmem:[%s152 + $0x24] sm:$0xf] %v171
                %v173 = vld [vmem:[%s151 + $0x28] sm:$0xf]
                %174 = vst [vmem:[%s152 + $0x28] sm:$0xf] %v173
                %v175 = vld [vmem:[%s151 + $0x2c] sm:$0xf]
                %176 = vst [vmem:[%s152 + $0x2c] sm:$0xf] %v175
                %v177 = vld [vmem:[%s151 + $0x30] sm:$0xf]
                %178 = vst [vmem:[%s152 + $0x30] sm:$0xf] %v177
                %v179 = vld [vmem:[%s151 + $0x34] sm:$0xf]
                %180 = vst [vmem:[%s152 + $0x34] sm:$0xf] %v179
                %v181 = vld [vmem:[%s151 + $0x38] sm:$0xf]
                %182 = vst [vmem:[%s152 + $0x38] sm:$0xf] %v181
                %v183 = vld [vmem:[%s151 + $0x3c] sm:$0xf]
                %184 = vst [vmem:[%s152 + $0x3c] sm:$0xf] %v183
                %v185 = vld [vmem:[%s151 + $0x40] sm:$0xf]
                %186 = vst [vmem:[%s152 + $0x40] sm:$0xf] %v185
                %v187 = vld [vmem:[%s151 + $0x44] sm:$0xf]
                %188 = vst [vmem:[%s152 + $0x44] sm:$0xf] %v187
                %v189 = vld [vmem:[%s151 + $0x90] sm:$0xf]
                %190 = vst [vmem:[%s152 + $0x48] sm:$0xf] %v189
                %v191 = vld [vmem:[%s151 + $0x94] sm:$0xf]
                %192 = vst [vmem:[%s152 + $0x4c] sm:$0xf] %v191
                %v193 = vld [vmem:[%s151 + $0x98] sm:$0xf]
                %194 = vst [vmem:[%s152 + $0x50] sm:$0xf] %v193
                %v195 = vld [vmem:[%s151 + $0x9c] sm:$0xf]
                %196 = vst [vmem:[%s152 + $0x54] sm:$0xf] %v195
                %v197 = vld [vmem:[%s151 + $0xa0] sm:$0xf]
                %198 = vst [vmem:[%s152 + $0x58] sm:$0xf] %v197
                %v199 = vld [vmem:[%s151 + $0xa4] sm:$0xf]
                %200 = vst [vmem:[%s152 + $0x5c] sm:$0xf] %v199
                %v201 = vld [vmem:[%s151 + $0xa8] sm:$0xf]
                %202 = vst [vmem:[%s152 + $0x60] sm:$0xf] %v201
                %v203 = vld [vmem:[%s151 + $0xac] sm:$0xf]
                %204 = vst [vmem:[%s152 + $0x64] sm:$0xf] %v203
                %v205 = vld [vmem:[%s151 + $0xb0] sm:$0xf]
                %206 = vst [vmem:[%s152 + $0x68] sm:$0xf] %v205
                %v207 = vld [vmem:[%s151 + $0xb4] sm:$0xf]
                %208 = vst [vmem:[%s152 + $0x6c] sm:$0xf] %v207
                %v209 = vld [vmem:[%s151 + $0xb8] sm:$0xf]
                %210 = vst [vmem:[%s152 + $0x70] sm:$0xf] %v209
                %v211 = vld [vmem:[%s151 + $0xbc] sm:$0xf]
                %212 = vst [vmem:[%s152 + $0x74] sm:$0xf] %v211
                %v213 = vld [vmem:[%s151 + $0xc0] sm:$0xf]
                %214 = vst [vmem:[%s152 + $0x78] sm:$0xf] %v213
                %v215 = vld [vmem:[%s151 + $0xc4] sm:$0xf]
                %216 = vst [vmem:[%s152 + $0x7c] sm:$0xf] %v215
                %v217 = vld [vmem:[%s151 + $0xc8] sm:$0xf]
                %218 = vst [vmem:[%s152 + $0x80] sm:$0xf] %v217
                %v219 = vld [vmem:[%s151 + $0xcc] sm:$0xf]
                %220 = vst [vmem:[%s152 + $0x84] sm:$0xf] %v219
                %v221 = vld [vmem:[%s151 + $0xd0] sm:$0xf]
                %222 = vst [vmem:[%s152 + $0x88] sm:$0xf] %v221
                %v223 = vld [vmem:[%s151 + $0xd4] sm:$0xf]
                %224 = vst [vmem:[%s152 + $0x8c] sm:$0xf] %v223
                %v225 = vld [vmem:[%s151 + $0x120] sm:$0xf]
                %226 = vst [vmem:[%s152 + $0x90] sm:$0xf] %v225
                %v227 = vld [vmem:[%s151 + $0x124] sm:$0xf]
                %228 = vst [vmem:[%s152 + $0x94] sm:$0xf] %v227
                %v229 = vld [vmem:[%s151 + $0x128] sm:$0xf]
                %230 = vst [vmem:[%s152 + $0x98] sm:$0xf] %v229
                %v231 = vld [vmem:[%s151 + $0x12c] sm:$0xf]
                %232 = vst [vmem:[%s152 + $0x9c] sm:$0xf] %v231
                %v233 = vld [vmem:[%s151 + $0x130] sm:$0xf]
                %234 = vst [vmem:[%s152 + $0xa0] sm:$0xf] %v233
                %v235 = vld [vmem:[%s151 + $0x134] sm:$0xf]
                %236 = vst [vmem:[%s152 + $0xa4] sm:$0xf] %v235
                %v237 = vld [vmem:[%s151 + $0x138] sm:$0xf]
                %238 = vst [vmem:[%s152 + $0xa8] sm:$0xf] %v237
                %v239 = vld [vmem:[%s151 + $0x13c] sm:$0xf]
                %240 = vst [vmem:[%s152 + $0xac] sm:$0xf] %v239
                %v241 = vld [vmem:[%s151 + $0x140] sm:$0xf]
                %242 = vst [vmem:[%s152 + $0xb0] sm:$0xf] %v241
                %v243 = vld [vmem:[%s151 + $0x144] sm:$0xf]
                %244 = vst [vmem:[%s152 + $0xb4] sm:$0xf] %v243
                %v245 = vld [vmem:[%s151 + $0x148] sm:$0xf]
                %246 = vst [vmem:[%s152 + $0xb8] sm:$0xf] %v245
                %v247 = vld [vmem:[%s151 + $0x14c] sm:$0xf]
                %248 = vst [vmem:[%s152 + $0xbc] sm:$0xf] %v247
                %v249 = vld [vmem:[%s151 + $0x150] sm:$0xf]
                %250 = vst [vmem:[%s152 + $0xc0] sm:$0xf] %v249
                %v251 = vld [vmem:[%s151 + $0x154] sm:$0xf]
                %252 = vst [vmem:[%s152 + $0xc4] sm:$0xf] %v251
                %v253 = vld [vmem:[%s151 + $0x158] sm:$0xf]
                %254 = vst [vmem:[%s152 + $0xc8] sm:$0xf] %v253
                %v255 = vld [vmem:[%s151 + $0x15c] sm:$0xf]
                %256 = vst [vmem:[%s152 + $0xcc] sm:$0xf] %v255
                %v257 = vld [vmem:[%s151 + $0x160] sm:$0xf]
                %258 = vst [vmem:[%s152 + $0xd0] sm:$0xf] %v257
                %v259 = vld [vmem:[%s151 + $0x164] sm:$0xf]
                %260 = vst [vmem:[%s152 + $0xd4] sm:$0xf] %v259
                %v261 = vld [vmem:[%s151 + $0x1b0] sm:$0xf]
                %262 = vst [vmem:[%s152 + $0xd8] sm:$0xf] %v261
                %v263 = vld [vmem:[%s151 + $0x1b4] sm:$0xf]
                %264 = vst [vmem:[%s152 + $0xdc] sm:$0xf] %v263
                %v265 = vld [vmem:[%s151 + $0x1b8] sm:$0xf]
                %266 = vst [vmem:[%s152 + $0xe0] sm:$0xf] %v265
                %v267 = vld [vmem:[%s151 + $0x1bc] sm:$0xf]
                %268 = vst [vmem:[%s152 + $0xe4] sm:$0xf] %v267
                %v269 = vld [vmem:[%s151 + $0x1c0] sm:$0xf]
                %270 = vst [vmem:[%s152 + $0xe8] sm:$0xf] %v269
                %v271 = vld [vmem:[%s151 + $0x1c4] sm:$0xf]
                %272 = vst [vmem:[%s152 + $0xec] sm:$0xf] %v271
                %v273 = vld [vmem:[%s151 + $0x1c8] sm:$0xf]
                %274 = vst [vmem:[%s152 + $0xf0] sm:$0xf] %v273
                %v275 = vld [vmem:[%s151 + $0x1cc] sm:$0xf]
                %276 = vst [vmem:[%s152 + $0xf4] sm:$0xf] %v275
                %v277 = vld [vmem:[%s151 + $0x1d0] sm:$0xf]
                %278 = vst [vmem:[%s152 + $0xf8] sm:$0xf] %v277
                %v279 = vld [vmem:[%s151 + $0x1d4] sm:$0xf]
                %280 = vst [vmem:[%s152 + $0xfc] sm:$0xf] %v279
                %v281 = vld [vmem:[%s151 + $0x1d8] sm:$0xf]
                %282 = vst [vmem:[%s152 + $0x100] sm:$0xf] %v281
                %v283 = vld [vmem:[%s151 + $0x1dc] sm:$0xf]
                %284 = vst [vmem:[%s152 + $0x104] sm:$0xf] %v283
                %v285 = vld [vmem:[%s151 + $0x1e0] sm:$0xf]
                %286 = vst [vmem:[%s152 + $0x108] sm:$0xf] %v285
                %v287 = vld [vmem:[%s151 + $0x1e4] sm:$0xf]
                %288 = vst [vmem:[%s152 + $0x10c] sm:$0xf] %v287
                %v289 = vld [vmem:[%s151 + $0x1e8] sm:$0xf]
                %290 = vst [vmem:[%s152 + $0x110] sm:$0xf] %v289
                %v291 = vld [vmem:[%s151 + $0x1ec] sm:$0xf]
                %292 = vst [vmem:[%s152 + $0x114] sm:$0xf] %v291
                %v293 = vld [vmem:[%s151 + $0x1f0] sm:$0xf]
                %294 = vst [vmem:[%s152 + $0x118] sm:$0xf] %v293
                %v295 = vld [vmem:[%s151 + $0x1f4] sm:$0xf]
                %296 = vst [vmem:[%s152 + $0x11c] sm:$0xf] %v295
              $region45: #{cnn_mnist_forward.3} parent=39 // loop_footer
                %s150 = sadd.s32 1, %s146
              $region46: #{cnn_mnist_forward.3} parent=39 // loop_footer_branch
                %145 = sbr.rel target = $region42
              $region47: #{cnn_mnist_forward.3} parent=39 // loop_exit
                _
            $region40: #{cnn_mnist_forward.3} parent=31 // pred_fallthru
              _
          $region32: #{cnn_mnist_forward.3} parent=27 // pred_fallthru
            _
          %460 = vnop
        $region28: #{cnn_mnist_forward.3} parent=23 // pred_fallthru
          _
      $region24: #{cnn_mnist_forward.3} parent=5 // pred_fallthru
        _
      %p461 = scmp.le.s32.totalorder 1, %s9
      %p462 = scmp.lt.s32.totalorder %s9, 3
      %p463 = pnand %p461, %p462
      %p464 = pneg %p463
      // Predicated region
      $region66: #{cnn_mnist_forward.3} parent=5 // pred_check
        _
      $region67: #{cnn_mnist_forward.3} parent=5 // pred_check_branch
        %466 = sbr.rel (%p463) target = $region69
      $region68: #{cnn_mnist_forward.3} parent=5 // pred_region
        %s467 = ssub.s32 %s9, 1
        %s468 = sand.u32 %s22, 1
        %s469 = sand.u32 %s22, 1
        %s470 = smul.addr %s469, 288
        %s471 = scalar_lea.vmem [#allocation2], %s470
        // Predicated region
        $region70: #{cnn_mnist_forward.3} parent=68 // pred_check
          %p472 = pneg %p35
        $region71: #{cnn_mnist_forward.3} parent=68 // pred_check_branch
          %474 = sbr.rel (%p472) target = $region73
        $region72: #{cnn_mnist_forward.3} parent=68 // pred_region
          _
        $region73: #{cnn_mnist_forward.3} parent=68 // pred_fallthru
          _
        %s475 = sand.u32 %s22, 1
        %s476 = sand.u32 %s22, 1
        %s477 = smul.addr %s476, 288
        %s478 = scalar_lea.vmem [#allocation2], %s477
        %p479 = pneg %p35
        %p480 = pneg %p32
        %p481 = pneg %p56
        %p482 = pneg %p53
        %p483 = pneg %p77
        %p484 = pneg %p74
        %p485 = pneg %p103
        %p486 = pneg %p100
        %s487 = smul.u32 18, %s14
        %p488 = scmp.lt.s32.totalorder %s487, 35
        %s489 = scalar_select %p488, %s487, 35
        %s490 = smul.addr %s489, 4
        %s491 = scalar_lea.vmem %s3, %s490
        %s492 = smul.u32 18, %s14
        %s493 = smul.u32 18, %s14
        %p494 = scmp.lt.s32.totalorder %s493, 35
        %s495 = scalar_select %p494, %s493, 35
        %s496 = smul.addr %s495, 4
        %s497 = scalar_lea.vmem %s3, %s496
        %s498 = smul.u32 18, %s14
        %v500 = vld [vmem:[%s1] sm:$0xf]
        %v501 = vld [vmem:[%s1 + $0x4] sm:$0xf]
        %v502 = vld [vmem:[%s1 + $0x8] sm:$0xf]
        %v503 = vld [vmem:[%s1 + $0xc] sm:$0x1]
        %v504 = vld [vmem:[%s471] sm:$0xf]
        %v505 = vld [vmem:[%s471 + $0x4] sm:$0xf]
        %v506 = vld [vmem:[%s471 + $0x8] sm:$0xf]
        %v507 = vld [vmem:[%s471 + $0xc] sm:$0xf]
        %v508 = vld [vmem:[%s471 + $0x10] sm:$0xf]
        %v509 = vld [vmem:[%s471 + $0x14] sm:$0xf]
        %v510 = vld [vmem:[%s471 + $0x18] sm:$0xf]
        %v511 = vld [vmem:[%s471 + $0x1c] sm:$0xf]
        %v512 = vld [vmem:[%s471 + $0x20] sm:$0xf]
        %v513 = vld [vmem:[%s471 + $0x24] sm:$0xf]
        %v514 = vld [vmem:[%s471 + $0x28] sm:$0xf]
        %v515 = vld [vmem:[%s471 + $0x2c] sm:$0xf]
        %v516 = vld [vmem:[%s471 + $0x30] sm:$0xf]
        %v517 = vld [vmem:[%s471 + $0x34] sm:$0xf]
        %v518 = vld [vmem:[%s471 + $0x38] sm:$0xf]
        %v519 = vld [vmem:[%s471 + $0x3c] sm:$0xf]
        %v520 = vld [vmem:[%s471 + $0x40] sm:$0xf]
        %v521 = vld [vmem:[%s471 + $0x44] sm:$0xf]
        %v540 = vunpack.c.l.b16 %v504
        %v541 = vunpack.c.l.b16 %v505
        %v542 = vunpack.c.l.b16 %v506
        %v543 = vunpack.c.l.b16 %v507
        %v544 = vunpack.c.l.b16 %v508
        %v545 = vunpack.c.l.b16 %v509
        %v546 = vunpack.c.l.b16 %v510
        %v547 = vunpack.c.l.b16 %v511
        %v548 = vunpack.c.l.b16 %v512
        %v549 = vunpack.c.l.b16 %v513
        %v550 = vunpack.c.l.b16 %v514
        %v551 = vunpack.c.l.b16 %v515
        %v552 = vunpack.c.l.b16 %v516
        %v553 = vunpack.c.l.b16 %v517
        %v554 = vunpack.c.l.b16 %v518
        %v555 = vunpack.c.l.b16 %v519
        %v556 = vunpack.c.l.b16 %v520
        %v557 = vunpack.c.l.b16 %v521
        %v558 = vpack.c.b16 %v541, %v540
        %v559 = vpack.c.b16 %v543, %v542
        %v560 = vpack.c.b16 %v545, %v544
        %v561 = vpack.c.b16 %v547, %v546
        %v562 = vpack.c.b16 %v549, %v548
        %v563 = vpack.c.b16 %v551, %v550
        %v564 = vpack.c.b16 %v553, %v552
        %v565 = vpack.c.b16 %v555, %v554
        %v566 = vpack.c.b16 %v557, %v556
        %v571 = vunpack.c.l.b16 %v500
        %v572 = vunpack.c.l.b16 %v501
        %v573 = vunpack.c.l.b16 %v502
        %v574 = vunpack.c.l.b16 %v503
        %v575 = vpack.c.b16 %v572, %v571
        %v576 = vpack.c.b16 %v574, %v573
        %vm578 = vcmask 203776
        %v580 = vsel %vm578, %v558, 0
        %v583 = vsel %vm578, %v559, 0
        %v586 = vsel %vm578, %v560, 0
        %v589 = vsel %vm578, %v561, 0
        %v592 = vsel %vm578, %v562, 0
        %v595 = vsel %vm578, %v563, 0
        %v598 = vsel %vm578, %v564, 0
        %v601 = vsel %vm578, %v565, 0
        %v604 = vsel %vm578, %v566, 0
        %vm606 = vcmask 1043456
        %vm607 = vcmask 1044480
        %v608 = vsel %vm606, 4294967295, 65535
        %v609 = vsel %vm607, %v608, 0
        %v611 = vand.u32 %v576, %v609
        %613 = vmatprep.subr.bf16.mxu0 0
        %614 = vmatpush1.bf16.msra.mxu0 %v575
        %615 = vmatprep.subr.bf16.mxu0 0
        %616 = vmatpush1.bf16.msra.mxu0 %v611
        %617 = vmatprep.subr.bf16.mxu0 0
        %618 = vmatpush1.bf16.msra.mxu0 0
        %619 = vmatprep.subr.bf16.mxu0 0
        %620 = vmatpush1.bf16.msra.mxu0 0
        %621 = vmatprep.subr.bf16.mxu0 0
        %622 = vmatpush1.bf16.msra.mxu0 0
        %623 = vmatprep.subr.bf16.mxu0 0
        %624 = vmatpush1.bf16.msra.mxu0 0
        %625 = vmatprep.subr.bf16.mxu0 0
        %626 = vmatpush1.bf16.msra.mxu0 0
        %627 = vmatprep.subr.bf16.mxu0 0
        %628 = vmatpush1.bf16.msra.mxu0 0
        %629 = vmatprep.subr.bf16.mxu0 0
        %630 = vmatpush1.bf16.msra.mxu0 0
        %631 = vmatprep.subr.bf16.mxu0 0
        %632 = vmatpush1.bf16.msra.mxu0 0
        %633 = vmatprep.subr.bf16.mxu0 0
        %634 = vmatpush1.bf16.msra.mxu0 0
        %635 = vmatprep.subr.bf16.mxu0 0
        %636 = vmatpush1.bf16.msra.mxu0 0
        %637 = vmatprep.subr.bf16.mxu0 0
        %638 = vmatpush1.bf16.msra.mxu0 0
        %639 = vmatprep.subr.bf16.mxu0 0
        %640 = vmatpush1.bf16.msra.mxu0 0
        %641 = vmatprep.subr.bf16.mxu0 0
        %642 = vmatpush1.bf16.msra.mxu0 0
        %643 = vmatprep.subr.bf16.mxu0 0
        %644 = vmatpush1.bf16.msra.mxu0 0
        %645 = vmatprep.mubr.bf16.mxu0 0
        %646 = vmatmul.mubr.bf16.gmra.mrb[0].mxu0 %v580
        %v647 = vpop.f32.mrb[0].mxu0
        %v648 = vadd.f32 0.0, %v647
        %v649 = vpop.f32.mrb[0].mxu0
        %v650 = vpop.f32.mrb[0].mxu0
        %v651 = vadd.f32 0.0, %v650
        %v652 = vpop.f32.mrb[0].mxu0
        %653 = vmatprep.mubr.bf16.mxu0 0
        %654 = vmatmul.mubr.bf16.gmra.mrb[0].mxu0 %v583
        %v655 = vpop.f32.mrb[0].mxu0
        %v656 = vadd.f32 0.0, %v655
        %v657 = vpop.f32.mrb[0].mxu0
        %v658 = vpop.f32.mrb[0].mxu0
        %v659 = vadd.f32 0.0, %v658
        %v660 = vpop.f32.mrb[0].mxu0
        %661 = vmatprep.mubr.bf16.mxu0 0
        %662 = vmatmul.mubr.bf16.gmra.mrb[0].mxu0 %v586
        %v663 = vpop.f32.mrb[0].mxu0
        %v664 = vadd.f32 0.0, %v663
        %v665 = vpop.f32.mrb[0].mxu0
        %v666 = vpop.f32.mrb[0].mxu0
        %v667 = vadd.f32 0.0, %v666
        %v668 = vpop.f32.mrb[0].mxu0
        %669 = vmatprep.mubr.bf16.mxu0 0
        %670 = vmatmul.mubr.bf16.gmra.mrb[0].mxu0 %v589
        %v671 = vpop.f32.mrb[0].mxu0
        %v672 = vadd.f32 0.0, %v671
        %v673 = vpop.f32.mrb[0].mxu0
        %v674 = vpop.f32.mrb[0].mxu0
        %v675 = vadd.f32 0.0, %v674
        %v676 = vpop.f32.mrb[0].mxu0
        %677 = vmatprep.mubr.bf16.mxu0 0
        %678 = vmatmul.mubr.bf16.gmra.mrb[0].mxu0 %v592
        %v679 = vpop.f32.mrb[0].mxu0
        %v680 = vadd.f32 0.0, %v679
        %v681 = vpop.f32.mrb[0].mxu0
        %v682 = vpop.f32.mrb[0].mxu0
        %v683 = vadd.f32 0.0, %v682
        %v684 = vpop.f32.mrb[0].mxu0
        %685 = vmatprep.mubr.bf16.mxu0 0
        %686 = vmatmul.mubr.bf16.gmra.mrb[0].mxu0 %v595
        %v687 = vpop.f32.mrb[0].mxu0
        %v688 = vadd.f32 0.0, %v687
        %v689 = vpop.f32.mrb[0].mxu0
        %v690 = vpop.f32.mrb[0].mxu0
        %v691 = vadd.f32 0.0, %v690
        %v692 = vpop.f32.mrb[0].mxu0
        %693 = vmatprep.mubr.bf16.mxu0 0
        %694 = vmatmul.mubr.bf16.gmra.mrb[0].mxu0 %v598
        %v695 = vpop.f32.mrb[0].mxu0
        %v696 = vadd.f32 0.0, %v695
        %v697 = vpop.f32.mrb[0].mxu0
        %v698 = vpop.f32.mrb[0].mxu0
        %v699 = vadd.f32 0.0, %v698
        %v700 = vpop.f32.mrb[0].mxu0
        %701 = vmatprep.mubr.bf16.mxu0 0
        %702 = vmatmul.mubr.bf16.gmra.mrb[0].mxu0 %v601
        %v703 = vpop.f32.mrb[0].mxu0
        %v704 = vadd.f32 0.0, %v703
        %v705 = vpop.f32.mrb[0].mxu0
        %v706 = vpop.f32.mrb[0].mxu0
        %v707 = vadd.f32 0.0, %v706
        %v708 = vpop.f32.mrb[0].mxu0
        %709 = vmatprep.mubr.bf16.mxu0 0
        %710 = vmatmul.mubr.bf16.gmra.mrb[0].mxu0 %v604
        %v711 = vpop.f32.mrb[0].mxu0
        %v712 = vadd.f32 0.0, %v711
        %v713 = vpop.f32.mrb[0].mxu0
        %v714 = vpop.f32.mrb[0].mxu0
        %v715 = vadd.f32 0.0, %v714
        %v716 = vpop.f32.mrb[0].mxu0
        %717 = vdwg.mxu0
        %s718 = scalar_lea.vmem %s471, 72 [#allocation2]
        %v719 = vld [vmem:[%s718] sm:$0xf]
        %v720 = vld [vmem:[%s718 + $0x4] sm:$0xf]
        %v721 = vld [vmem:[%s718 + $0x8] sm:$0xf]
        %v722 = vld [vmem:[%s718 + $0xc] sm:$0xf]
        %v723 = vld [vmem:[%s718 + $0x10] sm:$0xf]
        %v724 = vld [vmem:[%s718 + $0x14] sm:$0xf]
        %v725 = vld [vmem:[%s718 + $0x18] sm:$0xf]
        %v726 = vld [vmem:[%s718 + $0x1c] sm:$0xf]
        %v727 = vld [vmem:[%s718 + $0x20] sm:$0xf]
        %v728 = vld [vmem:[%s718 + $0x24] sm:$0xf]
        %v729 = vld [vmem:[%s718 + $0x28] sm:$0xf]
        %v730 = vld [vmem:[%s718 + $0x2c] sm:$0xf]
        %v731 = vld [vmem:[%s718 + $0x30] sm:$0xf]
        %v732 = vld [vmem:[%s718 + $0x34] sm:$0xf]
        %v733 = vld [vmem:[%s718 + $0x38] sm:$0xf]
        %v734 = vld [vmem:[%s718 + $0x3c] sm:$0xf]
        %v735 = vld [vmem:[%s718 + $0x40] sm:$0xf]
        %v736 = vld [vmem:[%s718 + $0x44] sm:$0xf]
        %v755 = vunpack.c.l.b16 %v719
        %v756 = vunpack.c.l.b16 %v720
        %v757 = vunpack.c.l.b16 %v721
        %v758 = vunpack.c.l.b16 %v722
        %v759 = vunpack.c.l.b16 %v723
        %v760 = vunpack.c.l.b16 %v724
        %v761 = vunpack.c.l.b16 %v725
        %v762 = vunpack.c.l.b16 %v726
        %v763 = vunpack.c.l.b16 %v727
        %v764 = vunpack.c.l.b16 %v728
        %v765 = vunpack.c.l.b16 %v729
        %v766 = vunpack.c.l.b16 %v730
        %v767 = vunpack.c.l.b16 %v731
        %v768 = vunpack.c.l.b16 %v732
        %v769 = vunpack.c.l.b16 %v733
        %v770 = vunpack.c.l.b16 %v734
        %v771 = vunpack.c.l.b16 %v735
        %v772 = vunpack.c.l.b16 %v736
        %v773 = vpack.c.b16 %v756, %v755
        %v774 = vpack.c.b16 %v758, %v757
        %v775 = vpack.c.b16 %v760, %v759
        %v776 = vpack.c.b16 %v762, %v761
        %v777 = vpack.c.b16 %v764, %v763
        %v778 = vpack.c.b16 %v766, %v765
        %v779 = vpack.c.b16 %v768, %v767
        %v780 = vpack.c.b16 %v770, %v769
        %v781 = vpack.c.b16 %v772, %v771
        %v783 = vsel %vm578, %v773, 0
        %v786 = vsel %vm578, %v774, 0
        %v789 = vsel %vm578, %v775, 0
        %v792 = vsel %vm578, %v776, 0
        %v795 = vsel %vm578, %v777, 0
        %v798 = vsel %vm578, %v778, 0
        %v801 = vsel %vm578, %v779, 0
        %v804 = vsel %vm578, %v780, 0
        %v807 = vsel %vm578, %v781, 0
        %809 = vmatprep.subr.bf16.mxu0 0
        %810 = vmatpush1.bf16.msra.mxu0 %v575
        %811 = vmatprep.subr.bf16.mxu0 0
        %812 = vmatpush1.bf16.msra.mxu0 %v611
        %813 = vmatprep.subr.bf16.mxu0 0
        %814 = vmatpush1.bf16.msra.mxu0 0
        %815 = vmatprep.subr.bf16.mxu0 0
        %816 = vmatpush1.bf16.msra.mxu0 0
        %817 = vmatprep.subr.bf16.mxu0 0
        %818 = vmatpush1.bf16.msra.mxu0 0
        %819 = vmatprep.subr.bf16.mxu0 0
        %820 = vmatpush1.bf16.msra.mxu0 0
        %821 = vmatprep.subr.bf16.mxu0 0
        %822 = vmatpush1.bf16.msra.mxu0 0
        %823 = vmatprep.subr.bf16.mxu0 0
        %824 = vmatpush1.bf16.msra.mxu0 0
        %825 = vmatprep.subr.bf16.mxu0 0
        %826 = vmatpush1.bf16.msra.mxu0 0
        %827 = vmatprep.subr.bf16.mxu0 0
        %828 = vmatpush1.bf16.msra.mxu0 0
        %829 = vmatprep.subr.bf16.mxu0 0
        %830 = vmatpush1.bf16.msra.mxu0 0
        %831 = vmatprep.subr.bf16.mxu0 0
        %832 = vmatpush1.bf16.msra.mxu0 0
        %833 = vmatprep.subr.bf16.mxu0 0
        %834 = vmatpush1.bf16.msra.mxu0 0
        %835 = vmatprep.subr.bf16.mxu0 0
        %836 = vmatpush1.bf16.msra.mxu0 0
        %837 = vmatprep.subr.bf16.mxu0 0
        %838 = vmatpush1.bf16.msra.mxu0 0
        %839 = vmatprep.subr.bf16.mxu0 0
        %840 = vmatpush1.bf16.msra.mxu0 0
        %841 = vmatprep.mubr.bf16.mxu0 0
        %842 = vmatmul.mubr.bf16.gmra.mrb[0].mxu0 %v783
        %v843 = vpop.f32.mrb[0].mxu0
        %v844 = vadd.f32 0.0, %v843
        %v845 = vpop.f32.mrb[0].mxu0
        %v846 = vpop.f32.mrb[0].mxu0
        %v847 = vadd.f32 0.0, %v846
        %v848 = vpop.f32.mrb[0].mxu0
        %849 = vmatprep.mubr.bf16.mxu0 0
        %850 = vmatmul.mubr.bf16.gmra.mrb[0].mxu0 %v786
        %v851 = vpop.f32.mrb[0].mxu0
        %v852 = vadd.f32 0.0, %v851
        %v853 = vpop.f32.mrb[0].mxu0
        %v854 = vpop.f32.mrb[0].mxu0
        %v855 = vadd.f32 0.0, %v854
        %v856 = vpop.f32.mrb[0].mxu0
        %857 = vmatprep.mubr.bf16.mxu0 0
        %858 = vmatmul.mubr.bf16.gmra.mrb[0].mxu0 %v789
        %v859 = vpop.f32.mrb[0].mxu0
        %v860 = vadd.f32 0.0, %v859
        %v861 = vpop.f32.mrb[0].mxu0
        %v862 = vpop.f32.mrb[0].mxu0
        %v863 = vadd.f32 0.0, %v862
        %v864 = vpop.f32.mrb[0].mxu0
        %865 = vmatprep.mubr.bf16.mxu0 0
        %866 = vmatmul.mubr.bf16.gmra.mrb[0].mxu0 %v792
        %v867 = vpop.f32.mrb[0].mxu0
        %v868 = vadd.f32 0.0, %v867
        %v869 = vpop.f32.mrb[0].mxu0
        %v870 = vpop.f32.mrb[0].mxu0
        %v871 = vadd.f32 0.0, %v870
        %v872 = vpop.f32.mrb[0].mxu0
        %873 = vmatprep.mubr.bf16.mxu0 0
        %874 = vmatmul.mubr.bf16.gmra.mrb[0].mxu0 %v795
        %v875 = vpop.f32.mrb[0].mxu0
        %v876 = vadd.f32 0.0, %v875
        %v877 = vpop.f32.mrb[0].mxu0
        %v878 = vpop.f32.mrb[0].mxu0
        %v879 = vadd.f32 0.0, %v878
        %v880 = vpop.f32.mrb[0].mxu0
        %881 = vmatprep.mubr.bf16.mxu0 0
        %882 = vmatmul.mubr.bf16.gmra.mrb[0].mxu0 %v798
        %v883 = vpop.f32.mrb[0].mxu0
        %v884 = vadd.f32 0.0, %v883
        %v885 = vpop.f32.mrb[0].mxu0
        %v886 = vpop.f32.mrb[0].mxu0
        %v887 = vadd.f32 0.0, %v886
        %v888 = vpop.f32.mrb[0].mxu0
        %889 = vmatprep.mubr.bf16.mxu0 0
        %890 = vmatmul.mubr.bf16.gmra.mrb[0].mxu0 %v801
        %v891 = vpop.f32.mrb[0].mxu0
        %v892 = vadd.f32 0.0, %v891
        %v893 = vpop.f32.mrb[0].mxu0
        %v894 = vpop.f32.mrb[0].mxu0
        %v895 = vadd.f32 0.0, %v894
        %v896 = vpop.f32.mrb[0].mxu0
        %897 = vmatprep.mubr.bf16.mxu0 0
        %898 = vmatmul.mubr.bf16.gmra.mrb[0].mxu0 %v804
        %v899 = vpop.f32.mrb[0].mxu0
        %v900 = vadd.f32 0.0, %v899
        %v901 = vpop.f32.mrb[0].mxu0
        %v902 = vpop.f32.mrb[0].mxu0
        %v903 = vadd.f32 0.0, %v902
        %v904 = vpop.f32.mrb[0].mxu0
        %905 = vmatprep.mubr.bf16.mxu0 0
        %906 = vmatmul.mubr.bf16.gmra.mrb[0].mxu0 %v807
        %v907 = vpop.f32.mrb[0].mxu0
        %v908 = vadd.f32 0.0, %v907
        %v909 = vpop.f32.mrb[0].mxu0
        %v910 = vpop.f32.mrb[0].mxu0
        %v911 = vadd.f32 0.0, %v910
        %v912 = vpop.f32.mrb[0].mxu0
        %913 = vdwg.mxu0
        %s914 = scalar_lea.vmem %s471, 144 [#allocation2]
        %v915 = vld [vmem:[%s914] sm:$0xf]
        %v916 = vld [vmem:[%s914 + $0x4] sm:$0xf]
        %v917 = vld [vmem:[%s914 + $0x8] sm:$0xf]
        %v918 = vld [vmem:[%s914 + $0xc] sm:$0xf]
        %v919 = vld [vmem:[%s914 + $0x10] sm:$0xf]
        %v920 = vld [vmem:[%s914 + $0x14] sm:$0xf]
        %v921 = vld [vmem:[%s914 + $0x18] sm:$0xf]
        %v922 = vld [vmem:[%s914 + $0x1c] sm:$0xf]
        %v923 = vld [vmem:[%s914 + $0x20] sm:$0xf]
        %v924 = vld [vmem:[%s914 + $0x24] sm:$0xf]
        %v925 = vld [vmem:[%s914 + $0x28] sm:$0xf]
        %v926 = vld [vmem:[%s914 + $0x2c] sm:$0xf]
        %v927 = vld [vmem:[%s914 + $0x30] sm:$0xf]
        %v928 = vld [vmem:[%s914 + $0x34] sm:$0xf]
        %v929 = vld [vmem:[%s914 + $0x38] sm:$0xf]
        %v930 = vld [vmem:[%s914 + $0x3c] sm:$0xf]
        %v931 = vld [vmem:[%s914 + $0x40] sm:$0xf]
        %v932 = vld [vmem:[%s914 + $0x44] sm:$0xf]
        %v951 = vunpack.c.l.b16 %v915
        %v952 = vunpack.c.l.b16 %v916
        %v953 = vunpack.c.l.b16 %v917
        %v954 = vunpack.c.l.b16 %v918
        %v955 = vunpack.c.l.b16 %v919
        %v956 = vunpack.c.l.b16 %v920
        %v957 = vunpack.c.l.b16 %v921
        %v958 = vunpack.c.l.b16 %v922
        %v959 = vunpack.c.l.b16 %v923
        %v960 = vunpack.c.l.b16 %v924
        %v961 = vunpack.c.l.b16 %v925
        %v962 = vunpack.c.l.b16 %v926
        %v963 = vunpack.c.l.b16 %v927
        %v964 = vunpack.c.l.b16 %v928
        %v965 = vunpack.c.l.b16 %v929
        %v966 = vunpack.c.l.b16 %v930
        %v967 = vunpack.c.l.b16 %v931
        %v968 = vunpack.c.l.b16 %v932
        %v969 = vpack.c.b16 %v952, %v951
        %v970 = vpack.c.b16 %v954, %v953
        %v971 = vpack.c.b16 %v956, %v955
        %v972 = vpack.c.b16 %v958, %v957
        %v973 = vpack.c.b16 %v960, %v959
        %v974 = vpack.c.b16 %v962, %v961
        %v975 = vpack.c.b16 %v964, %v963
        %v976 = vpack.c.b16 %v966, %v965
        %v977 = vpack.c.b16 %v968, %v967
        %v979 = vsel %vm578, %v969, 0
        %v982 = vsel %vm578, %v970, 0
        %v985 = vsel %vm578, %v971, 0
        %v988 = vsel %vm578, %v972, 0
        %v991 = vsel %vm578, %v973, 0
        %v994 = vsel %vm578, %v974, 0
        %v997 = vsel %vm578, %v975, 0
        %v1000 = vsel %vm578, %v976, 0
        %v1003 = vsel %vm578, %v977, 0
        %1005 = vmatprep.subr.bf16.mxu0 0
        %1006 = vmatpush1.bf16.msra.mxu0 %v575
        %1007 = vmatprep.subr.bf16.mxu0 0
        %1008 = vmatpush1.bf16.msra.mxu0 %v611
        %1009 = vmatprep.subr.bf16.mxu0 0
        %1010 = vmatpush1.bf16.msra.mxu0 0
        %1011 = vmatprep.subr.bf16.mxu0 0
        %1012 = vmatpush1.bf16.msra.mxu0 0
        %1013 = vmatprep.subr.bf16.mxu0 0
        %1014 = vmatpush1.bf16.msra.mxu0 0
        %1015 = vmatprep.subr.bf16.mxu0 0
        %1016 = vmatpush1.bf16.msra.mxu0 0
        %1017 = vmatprep.subr.bf16.mxu0 0
        %1018 = vmatpush1.bf16.msra.mxu0 0
        %1019 = vmatprep.subr.bf16.mxu0 0
        %1020 = vmatpush1.bf16.msra.mxu0 0
        %1021 = vmatprep.subr.bf16.mxu0 0
        %1022 = vmatpush1.bf16.msra.mxu0 0
        %1023 = vmatprep.subr.bf16.mxu0 0
        %1024 = vmatpush1.bf16.msra.mxu0 0
        %1025 = vmatprep.subr.bf16.mxu0 0
        %1026 = vmatpush1.bf16.msra.mxu0 0
        %1027 = vmatprep.subr.bf16.mxu0 0
        %1028 = vmatpush1.bf16.msra.mxu0 0
        %1029 = vmatprep.subr.bf16.mxu0 0
        %1030 = vmatpush1.bf16.msra.mxu0 0
        %1031 = vmatprep.subr.bf16.mxu0 0
        %1032 = vmatpush1.bf16.msra.mxu0 0
        %1033 = vmatprep.subr.bf16.mxu0 0
        %1034 = vmatpush1.bf16.msra.mxu0 0
        %1035 = vmatprep.subr.bf16.mxu0 0
        %1036 = vmatpush1.bf16.msra.mxu0 0
        %1037 = vmatprep.mubr.bf16.mxu0 0
        %1038 = vmatmul.mubr.bf16.gmra.mrb[0].mxu0 %v979
        %v1039 = vpop.f32.mrb[0].mxu0
        %v1040 = vadd.f32 0.0, %v1039
        %v1041 = vpop.f32.mrb[0].mxu0
        %v1042 = vpop.f32.mrb[0].mxu0
        %v1043 = vadd.f32 0.0, %v1042
        %v1044 = vpop.f32.mrb[0].mxu0
        %1045 = vmatprep.mubr.bf16.mxu0 0
        %1046 = vmatmul.mubr.bf16.gmra.mrb[0].mxu0 %v982
        %v1047 = vpop.f32.mrb[0].mxu0
        %v1048 = vadd.f32 0.0, %v1047
        %v1049 = vpop.f32.mrb[0].mxu0
        %v1050 = vpop.f32.mrb[0].mxu0
        %v1051 = vadd.f32 0.0, %v1050
        %v1052 = vpop.f32.mrb[0].mxu0
        %1053 = vmatprep.mubr.bf16.mxu0 0
        %1054 = vmatmul.mubr.bf16.gmra.mrb[0].mxu0 %v985
        %v1055 = vpop.f32.mrb[0].mxu0
        %v1056 = vadd.f32 0.0, %v1055
        %v1057 = vpop.f32.mrb[0].mxu0
        %v1058 = vpop.f32.mrb[0].mxu0
        %v1059 = vadd.f32 0.0, %v1058
        %v1060 = vpop.f32.mrb[0].mxu0
        %1061 = vmatprep.mubr.bf16.mxu0 0
        %1062 = vmatmul.mubr.bf16.gmra.mrb[0].mxu0 %v988
        %v1063 = vpop.f32.mrb[0].mxu0
        %v1064 = vadd.f32 0.0, %v1063
        %v1065 = vpop.f32.mrb[0].mxu0
        %v1066 = vpop.f32.mrb[0].mxu0
        %v1067 = vadd.f32 0.0, %v1066
        %v1068 = vpop.f32.mrb[0].mxu0
        %1069 = vmatprep.mubr.bf16.mxu0 0
        %1070 = vmatmul.mubr.bf16.gmra.mrb[0].mxu0 %v991
        %v1071 = vpop.f32.mrb[0].mxu0
        %v1072 = vadd.f32 0.0, %v1071
        %v1073 = vpop.f32.mrb[0].mxu0
        %v1074 = vpop.f32.mrb[0].mxu0
        %v1075 = vadd.f32 0.0, %v1074
        %v1076 = vpop.f32.mrb[0].mxu0
        %1077 = vmatprep.mubr.bf16.mxu0 0
        %1078 = vmatmul.mubr.bf16.gmra.mrb[0].mxu0 %v994
        %v1079 = vpop.f32.mrb[0].mxu0
        %v1080 = vadd.f32 0.0, %v1079
        %v1081 = vpop.f32.mrb[0].mxu0
        %v1082 = vpop.f32.mrb[0].mxu0
        %v1083 = vadd.f32 0.0, %v1082
        %v1084 = vpop.f32.mrb[0].mxu0
        %1085 = vmatprep.mubr.bf16.mxu0 0
        %1086 = vmatmul.mubr.bf16.gmra.mrb[0].mxu0 %v997
        %v1087 = vpop.f32.mrb[0].mxu0
        %v1088 = vadd.f32 0.0, %v1087
        %v1089 = vpop.f32.mrb[0].mxu0
        %v1090 = vpop.f32.mrb[0].mxu0
        %v1091 = vadd.f32 0.0, %v1090
        %v1092 = vpop.f32.mrb[0].mxu0
        %1093 = vmatprep.mubr.bf16.mxu0 0
        %1094 = vmatmul.mubr.bf16.gmra.mrb[0].mxu0 %v1000
        %v1095 = vpop.f32.mrb[0].mxu0
        %v1096 = vadd.f32 0.0, %v1095
        %v1097 = vpop.f32.mrb[0].mxu0
        %v1098 = vpop.f32.mrb[0].mxu0
        %v1099 = vadd.f32 0.0, %v1098
        %v1100 = vpop.f32.mrb[0].mxu0
        %1101 = vmatprep.mubr.bf16.mxu0 0
        %1102 = vmatmul.mubr.bf16.gmra.mrb[0].mxu0 %v1003
        %v1103 = vpop.f32.mrb[0].mxu0
        %v1104 = vadd.f32 0.0, %v1103
        %v1105 = vpop.f32.mrb[0].mxu0
        %v1106 = vpop.f32.mrb[0].mxu0
        %v1107 = vadd.f32 0.0, %v1106
        %v1108 = vpop.f32.mrb[0].mxu0
        %1109 = vdwg.mxu0
        %s1110 = scalar_lea.vmem %s471, 216 [#allocation2]
        %v1111 = vld [vmem:[%s1110] sm:$0xf]
        %v1112 = vld [vmem:[%s1110 + $0x4] sm:$0xf]
        %v1113 = vld [vmem:[%s1110 + $0x8] sm:$0xf]
        %v1114 = vld [vmem:[%s1110 + $0xc] sm:$0xf]
        %v1115 = vld [vmem:[%s1110 + $0x10] sm:$0xf]
        %v1116 = vld [vmem:[%s1110 + $0x14] sm:$0xf]
        %v1117 = vld [vmem:[%s1110 + $0x18] sm:$0xf]
        %v1118 = vld [vmem:[%s1110 + $0x1c] sm:$0xf]
        %v1119 = vld [vmem:[%s1110 + $0x20] sm:$0xf]
        %v1120 = vld [vmem:[%s1110 + $0x24] sm:$0xf]
        %v1121 = vld [vmem:[%s1110 + $0x28] sm:$0xf]
        %v1122 = vld [vmem:[%s1110 + $0x2c] sm:$0xf]
        %v1123 = vld [vmem:[%s1110 + $0x30] sm:$0xf]
        %v1124 = vld [vmem:[%s1110 + $0x34] sm:$0xf]
        %v1125 = vld [vmem:[%s1110 + $0x38] sm:$0xf]
        %v1126 = vld [vmem:[%s1110 + $0x3c] sm:$0xf]
        %v1127 = vld [vmem:[%s1110 + $0x40] sm:$0xf]
        %v1128 = vld [vmem:[%s1110 + $0x44] sm:$0xf]
        %v1147 = vunpack.c.l.b16 %v1111
        %v1148 = vunpack.c.l.b16 %v1112
        %v1149 = vunpack.c.l.b16 %v1113
        %v1150 = vunpack.c.l.b16 %v1114
        %v1151 = vunpack.c.l.b16 %v1115
        %v1152 = vunpack.c.l.b16 %v1116
        %v1153 = vunpack.c.l.b16 %v1117
        %v1154 = vunpack.c.l.b16 %v1118
        %v1155 = vunpack.c.l.b16 %v1119
        %v1156 = vunpack.c.l.b16 %v1120
        %v1157 = vunpack.c.l.b16 %v1121
        %v1158 = vunpack.c.l.b16 %v1122
        %v1159 = vunpack.c.l.b16 %v1123
        %v1160 = vunpack.c.l.b16 %v1124
        %v1161 = vunpack.c.l.b16 %v1125
        %v1162 = vunpack.c.l.b16 %v1126
        %v1163 = vunpack.c.l.b16 %v1127
        %v1164 = vunpack.c.l.b16 %v1128
        %v1165 = vpack.c.b16 %v1148, %v1147
        %v1166 = vpack.c.b16 %v1150, %v1149
        %v1167 = vpack.c.b16 %v1152, %v1151
        %v1168 = vpack.c.b16 %v1154, %v1153
        %v1169 = vpack.c.b16 %v1156, %v1155
        %v1170 = vpack.c.b16 %v1158, %v1157
        %v1171 = vpack.c.b16 %v1160, %v1159
        %v1172 = vpack.c.b16 %v1162, %v1161
        %v1173 = vpack.c.b16 %v1164, %v1163
        %v1175 = vsel %vm578, %v1165, 0
        %v1178 = vsel %vm578, %v1166, 0
        %v1181 = vsel %vm578, %v1167, 0
        %v1184 = vsel %vm578, %v1168, 0
        %v1187 = vsel %vm578, %v1169, 0
        %v1190 = vsel %vm578, %v1170, 0
        %v1193 = vsel %vm578, %v1171, 0
        %v1196 = vsel %vm578, %v1172, 0
        %v1199 = vsel %vm578, %v1173, 0
        %1201 = vmatprep.subr.bf16.mxu0 0
        %1202 = vmatpush1.bf16.msra.mxu0 %v575
        %1203 = vmatprep.subr.bf16.mxu0 0
        %1204 = vmatpush1.bf16.msra.mxu0 %v611
        %1205 = vmatprep.subr.bf16.mxu0 0
        %1206 = vmatpush1.bf16.msra.mxu0 0
        %1207 = vmatprep.subr.bf16.mxu0 0
        %1208 = vmatpush1.bf16.msra.mxu0 0
        %1209 = vmatprep.subr.bf16.mxu0 0
        %1210 = vmatpush1.bf16.msra.mxu0 0
        %1211 = vmatprep.subr.bf16.mxu0 0
        %1212 = vmatpush1.bf16.msra.mxu0 0
        %1213 = vmatprep.subr.bf16.mxu0 0
        %1214 = vmatpush1.bf16.msra.mxu0 0
        %1215 = vmatprep.subr.bf16.mxu0 0
        %1216 = vmatpush1.bf16.msra.mxu0 0
        %1217 = vmatprep.subr.bf16.mxu0 0
        %1218 = vmatpush1.bf16.msra.mxu0 0
        %1219 = vmatprep.subr.bf16.mxu0 0
        %1220 = vmatpush1.bf16.msra.mxu0 0
        %1221 = vmatprep.subr.bf16.mxu0 0
        %1222 = vmatpush1.bf16.msra.mxu0 0
        %1223 = vmatprep.subr.bf16.mxu0 0
        %1224 = vmatpush1.bf16.msra.mxu0 0
        %1225 = vmatprep.subr.bf16.mxu0 0
        %1226 = vmatpush1.bf16.msra.mxu0 0
        %1227 = vmatprep.subr.bf16.mxu0 0
        %1228 = vmatpush1.bf16.msra.mxu0 0
        %1229 = vmatprep.subr.bf16.mxu0 0
        %1230 = vmatpush1.bf16.msra.mxu0 0
        %1231 = vmatprep.subr.bf16.mxu0 0
        %1232 = vmatpush1.bf16.msra.mxu0 0
        %1233 = vmatprep.mubr.bf16.mxu0 0
        %1234 = vmatmul.mubr.bf16.gmra.mrb[0].mxu0 %v1175
        %v1235 = vpop.f32.mrb[0].mxu0
        %v1236 = vadd.f32 0.0, %v1235
        %v1237 = vpop.f32.mrb[0].mxu0
        %v1238 = vpop.f32.mrb[0].mxu0
        %v1239 = vadd.f32 0.0, %v1238
        %v1240 = vpop.f32.mrb[0].mxu0
        %1241 = vmatprep.mubr.bf16.mxu0 0
        %1242 = vmatmul.mubr.bf16.gmra.mrb[0].mxu0 %v1178
        %v1243 = vpop.f32.mrb[0].mxu0
        %v1244 = vadd.f32 0.0, %v1243
        %v1245 = vpop.f32.mrb[0].mxu0
        %v1246 = vpop.f32.mrb[0].mxu0
        %v1247 = vadd.f32 0.0, %v1246
        %v1248 = vpop.f32.mrb[0].mxu0
        %1249 = vmatprep.mubr.bf16.mxu0 0
        %1250 = vmatmul.mubr.bf16.gmra.mrb[0].mxu0 %v1181
        %v1251 = vpop.f32.mrb[0].mxu0
        %v1252 = vadd.f32 0.0, %v1251
        %v1253 = vpop.f32.mrb[0].mxu0
        %v1254 = vpop.f32.mrb[0].mxu0
        %v1255 = vadd.f32 0.0, %v1254
        %v1256 = vpop.f32.mrb[0].mxu0
        %1257 = vmatprep.mubr.bf16.mxu0 0
        %1258 = vmatmul.mubr.bf16.gmra.mrb[0].mxu0 %v1184
        %v1259 = vpop.f32.mrb[0].mxu0
        %v1260 = vadd.f32 0.0, %v1259
        %v1261 = vpop.f32.mrb[0].mxu0
        %v1262 = vpop.f32.mrb[0].mxu0
        %v1263 = vadd.f32 0.0, %v1262
        %v1264 = vpop.f32.mrb[0].mxu0
        %1265 = vmatprep.mubr.bf16.mxu0 0
        %1266 = vmatmul.mubr.bf16.gmra.mrb[0].mxu0 %v1187
        %v1267 = vpop.f32.mrb[0].mxu0
        %v1268 = vadd.f32 0.0, %v1267
        %v1269 = vpop.f32.mrb[0].mxu0
        %v1270 = vpop.f32.mrb[0].mxu0
        %v1271 = vadd.f32 0.0, %v1270
        %v1272 = vpop.f32.mrb[0].mxu0
        %1273 = vmatprep.mubr.bf16.mxu0 0
        %1274 = vmatmul.mubr.bf16.gmra.mrb[0].mxu0 %v1190
        %v1275 = vpop.f32.mrb[0].mxu0
        %v1276 = vadd.f32 0.0, %v1275
        %v1277 = vpop.f32.mrb[0].mxu0
        %v1278 = vpop.f32.mrb[0].mxu0
        %v1279 = vadd.f32 0.0, %v1278
        %v1280 = vpop.f32.mrb[0].mxu0
        %1281 = vmatprep.mubr.bf16.mxu0 0
        %1282 = vmatmul.mubr.bf16.gmra.mrb[0].mxu0 %v1193
        %v1283 = vpop.f32.mrb[0].mxu0
        %v1284 = vadd.f32 0.0, %v1283
        %v1285 = vpop.f32.mrb[0].mxu0
        %v1286 = vpop.f32.mrb[0].mxu0
        %v1287 = vadd.f32 0.0, %v1286
        %v1288 = vpop.f32.mrb[0].mxu0
        %1289 = vmatprep.mubr.bf16.mxu0 0
        %1290 = vmatmul.mubr.bf16.gmra.mrb[0].mxu0 %v1196
        %v1291 = vpop.f32.mrb[0].mxu0
        %v1292 = vadd.f32 0.0, %v1291
        %v1293 = vpop.f32.mrb[0].mxu0
        %v1294 = vpop.f32.mrb[0].mxu0
        %v1295 = vadd.f32 0.0, %v1294
        %v1296 = vpop.f32.mrb[0].mxu0
        %1297 = vmatprep.mubr.bf16.mxu0 0
        %1298 = vmatmul.mubr.bf16.gmra.mrb[0].mxu0 %v1199
        %v1299 = vpop.f32.mrb[0].mxu0
        %v1300 = vadd.f32 0.0, %v1299
        %v1301 = vpop.f32.mrb[0].mxu0
        %v1302 = vpop.f32.mrb[0].mxu0
        %v1303 = vadd.f32 0.0, %v1302
        %v1304 = vpop.f32.mrb[0].mxu0
        %1305 = vdwg.mxu0
        %v1306 = vmax.f32 %v648, %v844
        %v1307 = vmax.f32 %v651, %v847
        %v1308 = vmax.f32 %v656, %v852
        %v1309 = vmax.f32 %v659, %v855
        %v1310 = vmax.f32 %v664, %v860
        %v1311 = vmax.f32 %v667, %v863
        %v1312 = vmax.f32 %v672, %v868
        %v1313 = vmax.f32 %v675, %v871
        %v1314 = vmax.f32 %v680, %v876
        %v1315 = vmax.f32 %v683, %v879
        %v1316 = vmax.f32 %v688, %v884
        %v1317 = vmax.f32 %v691, %v887
        %v1318 = vmax.f32 %v696, %v892
        %v1319 = vmax.f32 %v699, %v895
        %v1320 = vmax.f32 %v704, %v900
        %v1321 = vmax.f32 %v707, %v903
        %v1322 = vmax.f32 %v712, %v908
        %v1323 = vmax.f32 %v715, %v911
        %v1324 = vmax.f32 %v1040, %v1236
        %v1325 = vmax.f32 %v1043, %v1239
        %v1326 = vmax.f32 %v1048, %v1244
        %v1327 = vmax.f32 %v1051, %v1247
        %v1328 = vmax.f32 %v1056, %v1252
        %v1329 = vmax.f32 %v1059, %v1255
        %v1330 = vmax.f32 %v1064, %v1260
        %v1331 = vmax.f32 %v1067, %v1263
        %v1332 = vmax.f32 %v1072, %v1268
        %v1333 = vmax.f32 %v1075, %v1271
        %v1334 = vmax.f32 %v1080, %v1276
        %v1335 = vmax.f32 %v1083, %v1279
        %v1336 = vmax.f32 %v1088, %v1284
        %v1337 = vmax.f32 %v1091, %v1287
        %v1338 = vmax.f32 %v1096, %v1292
        %v1339 = vmax.f32 %v1099, %v1295
        %v1340 = vmax.f32 %v1104, %v1300
        %v1341 = vmax.f32 %v1107, %v1303
        %v1342 = vmax.f32 %v1306, %v1324
        %v1343 = vmax.f32 %v1307, %v1325
        %v1344 = vmax.f32 %v1308, %v1326
        %v1345 = vmax.f32 %v1309, %v1327
        %v1346 = vmax.f32 %v1310, %v1328
        %v1347 = vmax.f32 %v1311, %v1329
        %v1348 = vmax.f32 %v1312, %v1330
        %v1349 = vmax.f32 %v1313, %v1331
        %v1350 = vmax.f32 %v1314, %v1332
        %v1351 = vmax.f32 %v1315, %v1333
        %v1352 = vmax.f32 %v1316, %v1334
        %v1353 = vmax.f32 %v1317, %v1335
        %v1354 = vmax.f32 %v1318, %v1336
        %v1355 = vmax.f32 %v1319, %v1337
        %v1356 = vmax.f32 %v1320, %v1338
        %v1357 = vmax.f32 %v1321, %v1339
        %v1358 = vmax.f32 %v1322, %v1340
        %v1359 = vmax.f32 %v1323, %v1341
        %v1360 = vld [vmem:[%s2] sm:$0x1]
        %v1362 = vlaneseq
        %v1363 = vshrl.u32 %v1362, 7
        %v1364 = vsub.s32 0, %v1363
        %v1365 = vrot.slane %v1360, %v1364
        %v1367 = vadd.f32 %v1342, %v1365
        %v1368 = vadd.f32 %v1343, %v1365
        %v1369 = vadd.f32 %v1344, %v1365
        %v1370 = vadd.f32 %v1345, %v1365
        %v1371 = vadd.f32 %v1346, %v1365
        %v1372 = vadd.f32 %v1347, %v1365
        %v1373 = vadd.f32 %v1348, %v1365
        %v1374 = vadd.f32 %v1349, %v1365
        %v1375 = vadd.f32 %v1350, %v1365
        %v1376 = vadd.f32 %v1351, %v1365
        %v1377 = vadd.f32 %v1352, %v1365
        %v1378 = vadd.f32 %v1353, %v1365
        %v1379 = vadd.f32 %v1354, %v1365
        %v1380 = vadd.f32 %v1355, %v1365
        %v1381 = vadd.f32 %v1356, %v1365
        %v1382 = vadd.f32 %v1357, %v1365
        %v1383 = vadd.f32 %v1358, %v1365
        %v1384 = vadd.f32 %v1359, %v1365
        %v1385 = vmax.f32 %v1367, 0.0
        %v1386 = vmax.f32 %v1368, 0.0
        %v1387 = vmax.f32 %v1369, 0.0
        %v1388 = vmax.f32 %v1370, 0.0
        %v1389 = vmax.f32 %v1371, 0.0
        %v1390 = vmax.f32 %v1372, 0.0
        %v1391 = vmax.f32 %v1373, 0.0
        %v1392 = vmax.f32 %v1374, 0.0
        %v1393 = vmax.f32 %v1375, 0.0
        %v1394 = vmax.f32 %v1376, 0.0
        %v1395 = vmax.f32 %v1377, 0.0
        %v1396 = vmax.f32 %v1378, 0.0
        %v1397 = vmax.f32 %v1379, 0.0
        %v1398 = vmax.f32 %v1380, 0.0
        %v1399 = vmax.f32 %v1381, 0.0
        %v1400 = vmax.f32 %v1382, 0.0
        %v1401 = vmax.f32 %v1383, 0.0
        %v1402 = vmax.f32 %v1384, 0.0
        %v1403 = vpack.c.bf16 %v1386, %v1385
        %v1404 = vpack.c.bf16 %v1388, %v1387
        %v1405 = vpack.c.bf16 %v1390, %v1389
        %v1406 = vpack.c.bf16 %v1392, %v1391
        %v1407 = vpack.c.bf16 %v1394, %v1393
        %v1408 = vpack.c.bf16 %v1396, %v1395
        %v1409 = vpack.c.bf16 %v1398, %v1397
        %v1410 = vpack.c.bf16 %v1400, %v1399
        %v1411 = vpack.c.bf16 %v1402, %v1401
        %v1421 = vunpack.c.l.b16 %v1403
        %v1422 = vunpack.c.h.b16 %v1403
        %v1423 = vunpack.c.l.b16 %v1404
        %v1424 = vunpack.c.h.b16 %v1404
        %v1425 = vunpack.c.l.b16 %v1405
        %v1426 = vunpack.c.h.b16 %v1405
        %v1427 = vunpack.c.l.b16 %v1406
        %v1428 = vunpack.c.h.b16 %v1406
        %v1429 = vunpack.c.l.b16 %v1407
        %v1430 = vunpack.c.h.b16 %v1407
        %v1431 = vunpack.c.l.b16 %v1408
        %v1432 = vunpack.c.h.b16 %v1408
        %v1433 = vunpack.c.l.b16 %v1409
        %v1434 = vunpack.c.h.b16 %v1409
        %v1435 = vunpack.c.l.b16 %v1410
        %v1436 = vunpack.c.h.b16 %v1410
        %v1437 = vunpack.c.l.b16 %v1411
        %v1438 = vunpack.c.h.b16 %v1411
        %v1439 = vpack.c.b16 %v1421, %v1421
        %v1440 = vpack.c.b16 %v1422, %v1422
        %v1441 = vpack.c.b16 %v1423, %v1423
        %v1442 = vpack.c.b16 %v1424, %v1424
        %v1443 = vpack.c.b16 %v1425, %v1425
        %v1444 = vpack.c.b16 %v1426, %v1426
        %v1445 = vpack.c.b16 %v1427, %v1427
        %v1446 = vpack.c.b16 %v1428, %v1428
        %v1447 = vpack.c.b16 %v1429, %v1429
        %v1448 = vpack.c.b16 %v1430, %v1430
        %v1449 = vpack.c.b16 %v1431, %v1431
        %v1450 = vpack.c.b16 %v1432, %v1432
        %v1451 = vpack.c.b16 %v1433, %v1433
        %v1452 = vpack.c.b16 %v1434, %v1434
        %v1453 = vpack.c.b16 %v1435, %v1435
        %v1454 = vpack.c.b16 %v1436, %v1436
        %v1455 = vpack.c.b16 %v1437, %v1437
        %v1456 = vpack.c.b16 %v1438, %v1438
        %vm1475 = vcmask 76800
        %1476 = vst.msk [vmem:[%s497] sm:$0xf] %vm1475, %v1439
        %1477 = vst.msk [vmem:[%s497 + $0x4] sm:$0xf] %vm1475, %v1440
        %1478 = vst.msk [vmem:[%s497 + $0x8] sm:$0xf] %vm1475, %v1441
        %1479 = vst.msk [vmem:[%s497 + $0xc] sm:$0xf] %vm1475, %v1442
        %1480 = vst.msk [vmem:[%s497 + $0x10] sm:$0xf] %vm1475, %v1443
        %1481 = vst.msk [vmem:[%s497 + $0x14] sm:$0xf] %vm1475, %v1444
        %1482 = vst.msk [vmem:[%s497 + $0x18] sm:$0xf] %vm1475, %v1445
        %1483 = vst.msk [vmem:[%s497 + $0x1c] sm:$0xf] %vm1475, %v1446
        %1484 = vst.msk [vmem:[%s497 + $0x20] sm:$0xf] %vm1475, %v1447
        %1485 = vst.msk [vmem:[%s497 + $0x24] sm:$0xf] %vm1475, %v1448
        %1486 = vst.msk [vmem:[%s497 + $0x28] sm:$0xf] %vm1475, %v1449
        %1487 = vst.msk [vmem:[%s497 + $0x2c] sm:$0xf] %vm1475, %v1450
        %1488 = vst.msk [vmem:[%s497 + $0x30] sm:$0xf] %vm1475, %v1451
        %1489 = vst.msk [vmem:[%s497 + $0x34] sm:$0xf] %vm1475, %v1452
        %1490 = vst.msk [vmem:[%s497 + $0x38] sm:$0xf] %vm1475, %v1453
        %1491 = vst.msk [vmem:[%s497 + $0x3c] sm:$0xf] %vm1475, %v1454
        %1492 = vst.msk [vmem:[%s497 + $0x40] sm:$0xf] %vm1475, %v1455
        %1493 = vst.msk [vmem:[%s497 + $0x44] sm:$0xf] %vm1475, %v1456
        %s1494 = smul.u32 18, %s14
        %p1495 = scmp.lt.s32.totalorder %s1494, 35
        %s1496 = scalar_select %p1495, %s1494, 35
        %s1497 = smul.addr %s1496, 4
        %s1498 = scalar_lea.vmem %s3, %s1497
        // Predicated region
        $region74: #{cnn_mnist_forward.3} parent=68 // pred_check
          %p1499 = pneg %p100
        $region75: #{cnn_mnist_forward.3} parent=68 // pred_check_branch
          %1501 = sbr.rel (%p1499) target = $region77
        $region76: #{cnn_mnist_forward.3} parent=68 // pred_region
          %s1502 = smul.u32 18, %s14
        $region77: #{cnn_mnist_forward.3} parent=68 // pred_fallthru
          _
      $region69: #{cnn_mnist_forward.3} parent=5 // pred_fallthru
        _
      %p1503 = scmp.le.s32.totalorder 2, %s9
      // Predicated region
      $region78: #{cnn_mnist_forward.3} parent=5 // pred_check
        %p1504 = pneg %p1503
      $region79: #{cnn_mnist_forward.3} parent=5 // pred_check_branch
        %1506 = sbr.rel (%p1504) target = $region81
      $region80: #{cnn_mnist_forward.3} parent=5 // pred_region
        %s1507 = ssub.s32 %s9, 2
        // Predicated region
        $region82: #{cnn_mnist_forward.3} parent=80 // pred_check
          %p1508 = pneg %p106
        $region83: #{cnn_mnist_forward.3} parent=80 // pred_check_branch
          %1510 = sbr.rel (%p1508) target = $region85
        $region84: #{cnn_mnist_forward.3} parent=80 // pred_region
          %s1511 = smul.u32 18, %s15
          %p1512 = scmp.lt.s32.totalorder %s1511, 35
          %s1513 = scalar_select %p1512, %s1511, 35
          %s1514 = smul.addr %s1513, 4
          %s1515 = scalar_lea.vmem %s3, %s1514
        $region85: #{cnn_mnist_forward.3} parent=80 // pred_fallthru
          _
      $region81: #{cnn_mnist_forward.3} parent=5 // pred_fallthru
        _
    $region6: #{cnn_mnist_forward.3} parent=1 // loop_footer
      %s13 = sadd.s32 1, %s9
    $region7: #{cnn_mnist_forward.3} parent=1 // loop_footer_branch
      %8 = sbr.rel target = $region3
    $region8: #{cnn_mnist_forward.3} parent=1 // loop_exit
      _

// kernel: cnn_mnist_forward.4
$region0: #{cnn_mnist_forward.4}
  #allocation0 [shape = 'u32[]', space=smem, size = 0x4, offset = 0x4, fixed_abs, tag = 'smem constant byte address 0x4 - core index']
  #allocation1 [shape = 'u32[144,128]{1,0:T(1,128)}', space=vmem, size = 0x12000, scoped, tag = 'internal scratch']
  %s0 = inlined_call_operand.vmem [shape: bf16[4,32,250], index: 0, kind: input, shape index: {}]
  %s1 = inlined_call_operand.vmem [shape: bf16[250,20], index: 1, kind: input, shape index: {}]
  %s2 = inlined_call_operand.vmem [shape: f32[1,20], index: 2, kind: input, shape index: {}]
  %s3 = inlined_call_operand.vmem [shape: bf16[32,20], index: 3, kind: output, shape index: {}]
  %s4 = sld [smem:[#allocation0]]
  $region83: #{cnn_mnist_forward.4} parent=0
    _
  %s6 = ssub.s32 1, %s4
  %s7 = scalar_select 0, %s6, %s4
  $region1: #{cnn_mnist_forward.4} parent=0
    #allocation2 [shape = 'u8[65536]{0}', space=vmem, size = 0x10000, scoped, tag = 'input window, operand 0']
    loop: start=0, step=1, limit=4
    $region2: #{cnn_mnist_forward.4} parent=1 // loop_pre_header
      _
    $region3: #{cnn_mnist_forward.4} parent=1 // loop_header
      %s9 = sphi 0, %s13
      %p10 = scmp.ge.s32.totalorder %s9, 4
      %s19 = sphi 0, %s21
      %s22 = sphi 0, %s19
      %s23 = sphi 0, %s22
      %s39 = sphi 0, %s23
      %s43 = sphi 0, %s43
      %s45 = sphi 0, %s43
      %s46 = sphi 0, %s45
      %s60 = sphi 0, %s46
      %s64 = sphi 0, %s64
      %s66 = sphi 0, %s64
      %s67 = sphi 0, %s66
      %s81 = sphi 0, %s67
      %s87 = sphi 0, %s89
      %s90 = sphi 0, %s87
      %s91 = sphi 0, %s90
      %s107 = sphi 0, %s91
    $region4: #{cnn_mnist_forward.4} parent=1 // loop_header_branch
      %12 = sbr.rel (%p10) target = $region8
    $region5: #{cnn_mnist_forward.4} parent=1 // loop_body
      %s14 = ssub.s32 %s9, 1
      %s15 = ssub.s32 %s9, 2
      %s16 = sadd.s32 %s9, 1
      %s17 = ssub.s32 %s9, %s16
      %p18 = scmp.eq.s32.totalorder %s17, 0
      %s20 = sadd.s32 %s19, 1
      %s21 = scalar_select %p18, %s19, %s20
      %p24 = pneg %p18
      %p25 = scmp.eq.s32.totalorder %s9, 1
      %p26 = por %p24, %p25
      %p27 = scmp.ne.s32.totalorder %s19, %s22
      %p28 = scmp.eq.s32.totalorder %s9, 0
      %p29 = por %p27, %p28
      %p30 = scmp.ne.s32.totalorder %s19, %s22
      %p31 = scmp.eq.s32.totalorder %s14, 1
      %p32 = por %p30, %p31
      %p33 = scmp.ne.s32.totalorder %s22, %s23
      %p34 = scmp.eq.s32.totalorder %s14, 0
      %p35 = por %p33, %p34
      %p36 = scmp.ne.s32.totalorder %s22, %s23
      %p37 = scmp.eq.s32.totalorder %s15, 1
      %p38 = por %p36, %p37
      %p40 = scmp.ne.s32.totalorder %s23, %s39
      %p41 = scmp.eq.s32.totalorder %s15, 0
      %p42 = por %p40, %p41
      %s44 = sadd.s32 %s43, 1
      %p47 = scmp.eq.s32.totalorder %s9, 1
      %p48 = scmp.ne.s32.totalorder %s43, %s45
      %p49 = scmp.eq.s32.totalorder %s9, 0
      %p50 = por %p48, %p49
      %p51 = scmp.ne.s32.totalorder %s43, %s45
      %p52 = scmp.eq.s32.totalorder %s14, 1
      %p53 = por %p51, %p52
      %p54 = scmp.ne.s32.totalorder %s45, %s46
      %p55 = scmp.eq.s32.totalorder %s14, 0
      %p56 = por %p54, %p55
      %p57 = scmp.ne.s32.totalorder %s45, %s46
      %p58 = scmp.eq.s32.totalorder %s15, 1
      %p59 = por %p57, %p58
      %p61 = scmp.ne.s32.totalorder %s46, %s60
      %p62 = scmp.eq.s32.totalorder %s15, 0
      %p63 = por %p61, %p62
      %s65 = sadd.s32 %s64, 1
      %p68 = scmp.eq.s32.totalorder %s9, 1
      %p69 = scmp.ne.s32.totalorder %s64, %s66
      %p70 = scmp.eq.s32.totalorder %s9, 0
      %p71 = por %p69, %p70
      %p72 = scmp.ne.s32.totalorder %s64, %s66
      %p73 = scmp.eq.s32.totalorder %s14, 1
      %p74 = por %p72, %p73
      %p75 = scmp.ne.s32.totalorder %s66, %s67
      %p76 = scmp.eq.s32.totalorder %s14, 0
      %p77 = por %p75, %p76
      %p78 = scmp.ne.s32.totalorder %s66, %s67
      %p79 = scmp.eq.s32.totalorder %s15, 1
      %p80 = por %p78, %p79
      %p82 = scmp.ne.s32.totalorder %s67, %s81
      %p83 = scmp.eq.s32.totalorder %s15, 0
      %p84 = por %p82, %p83
      %s85 = ssub.s32 %s9, %s16
      %p86 = scmp.eq.s32.totalorder %s85, 0
      %s88 = sadd.s32 %s87, 1
      %s89 = scalar_select %p86, %s87, %s88
      %p92 = pneg %p86
      %p93 = scmp.eq.s32.totalorder %s9, 1
      %p94 = por %p92, %p93
      %p95 = scmp.ne.s32.totalorder %s87, %s90
      %p96 = scmp.eq.s32.totalorder %s9, 0
      %p97 = por %p95, %p96
      %p98 = scmp.ne.s32.totalorder %s87, %s90
      %p99 = scmp.eq.s32.totalorder %s14, 1
      %p100 = por %p98, %p99
      %p101 = scmp.ne.s32.totalorder %s90, %s91
      %p102 = scmp.eq.s32.totalorder %s14, 0
      %p103 = por %p101, %p102
      %p104 = scmp.ne.s32.totalorder %s90, %s91
      %p105 = scmp.eq.s32.totalorder %s15, 1
      %p106 = por %p104, %p105
      %p108 = scmp.ne.s32.totalorder %s91, %s107
      %p109 = scmp.eq.s32.totalorder %s15, 0
      %p110 = por %p108, %p109
      %p111 = scmp.le.s32.totalorder 1, %s9
      %p112 = scmp.lt.s32.totalorder %s9, 3
      %p113 = pnand %p111, %p112
      %p114 = pneg %p113
      // Predicated region
      $region9: #{cnn_mnist_forward.4} parent=5 // pred_check
        _
      $region10: #{cnn_mnist_forward.4} parent=5 // pred_check_branch
        %116 = sbr.rel (%p113) target = $region12
      $region11: #{cnn_mnist_forward.4} parent=5 // pred_region
        %s117 = ssub.s32 %s9, 1
        // Predicated region
        $region13: #{cnn_mnist_forward.4} parent=11 // pred_check
          %p118 = pneg %p56
        $region14: #{cnn_mnist_forward.4} parent=11 // pred_check_branch
          %120 = sbr.rel (%p118) target = $region16
        $region15: #{cnn_mnist_forward.4} parent=11 // pred_region
          _
        $region16: #{cnn_mnist_forward.4} parent=11 // pred_fallthru
          _
        // Predicated region
        $region17: #{cnn_mnist_forward.4} parent=11 // pred_check
          %p121 = pneg %p77
        $region18: #{cnn_mnist_forward.4} parent=11 // pred_check_branch
          %123 = sbr.rel (%p121) target = $region20
        $region19: #{cnn_mnist_forward.4} parent=11 // pred_region
          _
        $region20: #{cnn_mnist_forward.4} parent=11 // pred_fallthru
          _
      $region12: #{cnn_mnist_forward.4} parent=5 // pred_fallthru
        _
      %p124 = scmp.lt.s32.totalorder %s9, 2
      // Predicated region
      $region21: #{cnn_mnist_forward.4} parent=5 // pred_check
        %p125 = pneg %p124
      $region22: #{cnn_mnist_forward.4} parent=5 // pred_check_branch
        %127 = sbr.rel (%p125) target = $region24
      $region23: #{cnn_mnist_forward.4} parent=5 // pred_region
        // Predicated region
        $region25: #{cnn_mnist_forward.4} parent=23 // pred_check
          %p128 = pneg %p29
        $region26: #{cnn_mnist_forward.4} parent=23 // pred_check_branch
          %130 = sbr.rel (%p128) target = $region28
        $region27: #{cnn_mnist_forward.4} parent=23 // pred_region
          %s131 = sand.u32 %s19, 1
          %s132 = sand.u32 %s19, 1
          %s133 = smul.addr %s132, 64
          %s134 = scalar_lea.vmem [#allocation2], %s133
          %s135 = smul.u32 2, %s9
          %s136 = smul.addr %s135, 2
          %s137 = smul.addr %s136, 4
          %s138 = scalar_lea.vmem %s0, %s137
          // Predicated region
          $region29: #{cnn_mnist_forward.4} parent=27 // pred_check
            _
          $region30: #{cnn_mnist_forward.4} parent=27 // pred_check_branch
            %140 = sbr.rel (0) target = $region32
          $region31: #{cnn_mnist_forward.4} parent=27 // pred_region
            // Predicated region
            $region33: #{cnn_mnist_forward.4} parent=31 // pred_check
              _
            $region34: #{cnn_mnist_forward.4} parent=31 // pred_check_branch
              %142 = sbr.rel (0) target = $region36
            $region35: #{cnn_mnist_forward.4} parent=31 // pred_region
              // Predicated region
              $region48: #{cnn_mnist_forward.4} parent=35 // pred_check
                _
              $region49: #{cnn_mnist_forward.4} parent=35 // pred_check_branch
                %171 = sbr.rel (0) target = $region51
              $region50: #{cnn_mnist_forward.4} parent=35 // pred_region
                loop: start=0, step=1, limit=1
                $region52: #{cnn_mnist_forward.4} parent=50 // loop_pre_header
                  _
                $region53: #{cnn_mnist_forward.4} parent=50 // loop_header
                  %s173 = sphi 0, %s177
                  %p174 = scmp.ge.s32.totalorder %s173, 1
                  %s178 = sphi %s138, %s138
                  %s179 = sphi %s134, %s134
                $region54: #{cnn_mnist_forward.4} parent=50 // loop_header_branch
                  %176 = sbr.rel (%p174) target = $region58
                $region55: #{cnn_mnist_forward.4} parent=50 // loop_body
                  %v180 = vld [vmem:[%s178] sm:$0xff]
                  %181 = vst [vmem:[%s179] sm:$0xff] %v180
                  %v182 = vld [vmem:[%s178 + $0x8] sm:$0xff]
                  %183 = vst [vmem:[%s179 + $0x8] sm:$0xff] %v182
                  %v184 = vld [vmem:[%s178 + $0x20] sm:$0xff]
                  %185 = vst [vmem:[%s179 + $0x10] sm:$0xff] %v184
                  %v186 = vld [vmem:[%s178 + $0x28] sm:$0xff]
                  %187 = vst [vmem:[%s179 + $0x18] sm:$0xff] %v186
                  %v188 = vld [vmem:[%s178 + $0x40] sm:$0xff]
                  %189 = vst [vmem:[%s179 + $0x20] sm:$0xff] %v188
                  %v190 = vld [vmem:[%s178 + $0x48] sm:$0xff]
                  %191 = vst [vmem:[%s179 + $0x28] sm:$0xff] %v190
                  %v192 = vld [vmem:[%s178 + $0x60] sm:$0xff]
                  %193 = vst [vmem:[%s179 + $0x30] sm:$0xff] %v192
                  %v194 = vld [vmem:[%s178 + $0x68] sm:$0xff]
                  %195 = vst [vmem:[%s179 + $0x38] sm:$0xff] %v194
                $region56: #{cnn_mnist_forward.4} parent=50 // loop_footer
                  %s177 = sadd.s32 1, %s173
                $region57: #{cnn_mnist_forward.4} parent=50 // loop_footer_branch
                  %172 = sbr.rel target = $region53
                $region58: #{cnn_mnist_forward.4} parent=50 // loop_exit
                  _
              $region51: #{cnn_mnist_forward.4} parent=35 // pred_fallthru
                _
              // Predicated region
              $region59: #{cnn_mnist_forward.4} parent=35 // pred_check
                _
              $region60: #{cnn_mnist_forward.4} parent=35 // pred_check_branch
                %197 = sbr.rel target = $region62
              $region61: #{cnn_mnist_forward.4} parent=35 // pred_region
                _
              $region62: #{cnn_mnist_forward.4} parent=35 // pred_fallthru
                _
            $region36: #{cnn_mnist_forward.4} parent=31 // pred_fallthru
              _
            // Predicated region
            $region37: #{cnn_mnist_forward.4} parent=31 // pred_check
              _
            $region38: #{cnn_mnist_forward.4} parent=31 // pred_check_branch
              %144 = sbr.rel target = $region40
            $region39: #{cnn_mnist_forward.4} parent=31 // pred_region
              loop: start=0, step=1, limit=1
              $region41: #{cnn_mnist_forward.4} parent=39 // loop_pre_header
                _
              $region42: #{cnn_mnist_forward.4} parent=39 // loop_header
                %s147 = sphi 0, %s151
                %p148 = scmp.ge.s32.totalorder %s147, 1
                %s152 = sphi %s138, %s138
                %s153 = sphi %s134, %s134
              $region43: #{cnn_mnist_forward.4} parent=39 // loop_header_branch
                %150 = sbr.rel (%p148) target = $region47
              $region44: #{cnn_mnist_forward.4} parent=39 // loop_body
                %v154 = vld [vmem:[%s152] sm:$0xff]
                %155 = vst [vmem:[%s153] sm:$0xff] %v154
                %v156 = vld [vmem:[%s152 + $0x8] sm:$0xff]
                %157 = vst [vmem:[%s153 + $0x8] sm:$0xff] %v156
                %v158 = vld [vmem:[%s152 + $0x20] sm:$0xff]
                %159 = vst [vmem:[%s153 + $0x10] sm:$0xff] %v158
                %v160 = vld [vmem:[%s152 + $0x28] sm:$0xff]
                %161 = vst [vmem:[%s153 + $0x18] sm:$0xff] %v160
                %v162 = vld [vmem:[%s152 + $0x40] sm:$0xff]
                %163 = vst [vmem:[%s153 + $0x20] sm:$0xff] %v162
                %v164 = vld [vmem:[%s152 + $0x48] sm:$0xff]
                %165 = vst [vmem:[%s153 + $0x28] sm:$0xff] %v164
                %v166 = vld [vmem:[%s152 + $0x60] sm:$0xff]
                %167 = vst [vmem:[%s153 + $0x30] sm:$0xff] %v166
                %v168 = vld [vmem:[%s152 + $0x68] sm:$0xff]
                %169 = vst [vmem:[%s153 + $0x38] sm:$0xff] %v168
              $region45: #{cnn_mnist_forward.4} parent=39 // loop_footer
                %s151 = sadd.s32 1, %s147
              $region46: #{cnn_mnist_forward.4} parent=39 // loop_footer_branch
                %146 = sbr.rel target = $region42
              $region47: #{cnn_mnist_forward.4} parent=39 // loop_exit
                _
            $region40: #{cnn_mnist_forward.4} parent=31 // pred_fallthru
              _
          $region32: #{cnn_mnist_forward.4} parent=27 // pred_fallthru
            _
          %198 = vnop
        $region28: #{cnn_mnist_forward.4} parent=23 // pred_fallthru
          _
      $region24: #{cnn_mnist_forward.4} parent=5 // pred_fallthru
        _
      %p199 = scmp.le.s32.totalorder 1, %s9
      %p200 = scmp.lt.s32.totalorder %s9, 3
      %p201 = pnand %p199, %p200
      %p202 = pneg %p201
      // Predicated region
      $region63: #{cnn_mnist_forward.4} parent=5 // pred_check
        _
      $region64: #{cnn_mnist_forward.4} parent=5 // pred_check_branch
        %204 = sbr.rel (%p201) target = $region66
      $region65: #{cnn_mnist_forward.4} parent=5 // pred_region
        %s205 = ssub.s32 %s9, 1
        %s206 = sand.u32 %s22, 1
        %s207 = sand.u32 %s22, 1
        %s208 = smul.addr %s207, 64
        %s209 = scalar_lea.vmem [#allocation2], %s208
        // Predicated region
        $region67: #{cnn_mnist_forward.4} parent=65 // pred_check
          %p210 = pneg %p35
        $region68: #{cnn_mnist_forward.4} parent=65 // pred_check_branch
          %212 = sbr.rel (%p210) target = $region70
        $region69: #{cnn_mnist_forward.4} parent=65 // pred_region
          _
        $region70: #{cnn_mnist_forward.4} parent=65 // pred_fallthru
          _
        %s213 = sand.u32 %s22, 1
        %s214 = sand.u32 %s22, 1
        %s215 = smul.addr %s214, 64
        %s216 = scalar_lea.vmem [#allocation2], %s215
        %p217 = pneg %p35
        %p218 = pneg %p32
        %p219 = pneg %p56
        %p220 = pneg %p53
        %p221 = pneg %p77
        %p222 = pneg %p74
        %p223 = pneg %p103
        %p224 = pneg %p100
        %s225 = smul.u32 2, %s14
        %p226 = scmp.lt.s32.totalorder %s225, 3
        %s227 = scalar_select %p226, %s225, 3
        %s228 = smul.addr %s227, 4
        %s229 = scalar_lea.vmem %s3, %s228
        %s230 = smul.u32 2, %s14
        %s231 = smul.u32 2, %s14
        %p232 = scmp.lt.s32.totalorder %s231, 3
        %s233 = scalar_select %p232, %s231, 3
        %s234 = smul.addr %s233, 4
        %s235 = scalar_lea.vmem %s3, %s234
        %s236 = smul.u32 2, %s14
        %v238 = vld [vmem:[%s1] sm:$0xf]
        %v239 = vld [vmem:[%s1 + $0x4] sm:$0xf]
        %v240 = vld [vmem:[%s1 + $0x8] sm:$0xf]
        %v241 = vld [vmem:[%s1 + $0xc] sm:$0xf]
        %v242 = vld [vmem:[%s1 + $0x10] sm:$0xf]
        %v243 = vld [vmem:[%s1 + $0x14] sm:$0xf]
        %v244 = vld [vmem:[%s1 + $0x18] sm:$0xf]
        %v245 = vld [vmem:[%s1 + $0x1c] sm:$0xf]
        %v246 = vld [vmem:[%s1 + $0x20] sm:$0xf]
        %v247 = vld [vmem:[%s1 + $0x24] sm:$0xf]
        %v248 = vld [vmem:[%s1 + $0x28] sm:$0xf]
        %v249 = vld [vmem:[%s1 + $0x2c] sm:$0xf]
        %v250 = vld [vmem:[%s1 + $0x30] sm:$0xf]
        %v251 = vld [vmem:[%s1 + $0x34] sm:$0xf]
        %v252 = vld [vmem:[%s1 + $0x38] sm:$0xf]
        %v253 = vld [vmem:[%s1 + $0x3c] sm:$0xf]
        %v254 = vld [vmem:[%s1 + $0x40] sm:$0xf]
        %v255 = vld [vmem:[%s1 + $0x44] sm:$0xf]
        %v256 = vld [vmem:[%s1 + $0x48] sm:$0xf]
        %v257 = vld [vmem:[%s1 + $0x4c] sm:$0xf]
        %v258 = vld [vmem:[%s1 + $0x50] sm:$0xf]
        %v259 = vld [vmem:[%s1 + $0x54] sm:$0xf]
        %v260 = vld [vmem:[%s1 + $0x58] sm:$0xf]
        %v261 = vld [vmem:[%s1 + $0x5c] sm:$0xf]
        %v262 = vld [vmem:[%s1 + $0x60] sm:$0xf]
        %v263 = vld [vmem:[%s1 + $0x64] sm:$0xf]
        %v264 = vld [vmem:[%s1 + $0x68] sm:$0xf]
        %v265 = vld [vmem:[%s1 + $0x6c] sm:$0xf]
        %v266 = vld [vmem:[%s1 + $0x70] sm:$0xf]
        %v267 = vld [vmem:[%s1 + $0x74] sm:$0xf]
        %v268 = vld [vmem:[%s1 + $0x78] sm:$0xf]
        %v269 = vld [vmem:[%s1 + $0x7c] sm:$0x1]
        %v270 = vld [vmem:[%s209] sm:$0xff]
        %v271 = vld [vmem:[%s209 + $0x8] sm:$0xff]
        %v274 = vunpack.c.l.b16 %v270
        %v275 = vunpack.c.h.b16 %v270
        %v276 = vunpack.c.l.b16 %v271
        %v277 = vunpack.c.h.b16 %v271
        %v278 = vpack.c.b16 %v276, %v274
        %v279 = vpack.c.b16 %v277, %v275
        %v313 = vunpack.c.l.b16 %v238
        %v314 = vunpack.c.l.b16 %v239
        %v315 = vunpack.c.l.b16 %v240
        %v316 = vunpack.c.l.b16 %v241
        %v317 = vunpack.c.l.b16 %v242
        %v318 = vunpack.c.l.b16 %v243
        %v319 = vunpack.c.l.b16 %v244
        %v320 = vunpack.c.l.b16 %v245
        %v321 = vunpack.c.l.b16 %v246
        %v322 = vunpack.c.l.b16 %v247
        %v323 = vunpack.c.l.b16 %v248
        %v324 = vunpack.c.l.b16 %v249
        %v325 = vunpack.c.l.b16 %v250
        %v326 = vunpack.c.l.b16 %v251
        %v327 = vunpack.c.l.b16 %v252
        %v328 = vunpack.c.l.b16 %v253
        %v329 = vunpack.c.l.b16 %v254
        %v330 = vunpack.c.l.b16 %v255
        %v331 = vunpack.c.l.b16 %v256
        %v332 = vunpack.c.l.b16 %v257
        %v333 = vunpack.c.l.b16 %v258
        %v334 = vunpack.c.l.b16 %v259
        %v335 = vunpack.c.l.b16 %v260
        %v336 = vunpack.c.l.b16 %v261
        %v337 = vunpack.c.l.b16 %v262
        %v338 = vunpack.c.l.b16 %v263
        %v339 = vunpack.c.l.b16 %v264
        %v340 = vunpack.c.l.b16 %v265
        %v341 = vunpack.c.l.b16 %v266
        %v342 = vunpack.c.l.b16 %v267
        %v343 = vunpack.c.l.b16 %v268
        %v344 = vunpack.c.l.b16 %v269
        %v345 = vpack.c.b16 %v314, %v313
        %v346 = vpack.c.b16 %v316, %v315
        %v347 = vpack.c.b16 %v318, %v317
        %v348 = vpack.c.b16 %v320, %v319
        %v349 = vpack.c.b16 %v322, %v321
        %v350 = vpack.c.b16 %v324, %v323
        %v351 = vpack.c.b16 %v326, %v325
        %v352 = vpack.c.b16 %v328, %v327
        %v353 = vpack.c.b16 %v330, %v329
        %v354 = vpack.c.b16 %v332, %v331
        %v355 = vpack.c.b16 %v334, %v333
        %v356 = vpack.c.b16 %v336, %v335
        %v357 = vpack.c.b16 %v338, %v337
        %v358 = vpack.c.b16 %v340, %v339
        %v359 = vpack.c.b16 %v342, %v341
        %v360 = vpack.c.b16 %v344, %v343
        %vm376 = vcmask 998400
        %v378 = vsel %vm376, %v279, 0
        %vm380 = vcmask 1044480
        %v382 = vsel %vm380, %v360, 0
        %384 = vmatprep.subr.bf16.mxu0 0
        %385 = vmatpush1.bf16.msra.mxu0 %v345
        %386 = vmatprep.subr.bf16.mxu0 0
        %387 = vmatpush1.bf16.msra.mxu0 %v346
        %388 = vmatprep.subr.bf16.mxu0 0
        %389 = vmatpush1.bf16.msra.mxu0 %v347
        %390 = vmatprep.subr.bf16.mxu0 0
        %391 = vmatpush1.bf16.msra.mxu0 %v348
        %392 = vmatprep.subr.bf16.mxu0 0
        %393 = vmatpush1.bf16.msra.mxu0 %v349
        %394 = vmatprep.subr.bf16.mxu0 0
        %395 = vmatpush1.bf16.msra.mxu0 %v350
        %396 = vmatprep.subr.bf16.mxu0 0
        %397 = vmatpush1.bf16.msra.mxu0 %v351
        %398 = vmatprep.subr.bf16.mxu0 0
        %399 = vmatpush1.bf16.msra.mxu0 %v352
        %400 = vmatprep.subr.bf16.mxu0 0
        %401 = vmatpush1.bf16.msra.mxu0 %v353
        %402 = vmatprep.subr.bf16.mxu0 0
        %403 = vmatpush1.bf16.msra.mxu0 %v354
        %404 = vmatprep.subr.bf16.mxu0 0
        %405 = vmatpush1.bf16.msra.mxu0 %v355
        %406 = vmatprep.subr.bf16.mxu0 0
        %407 = vmatpush1.bf16.msra.mxu0 %v356
        %408 = vmatprep.subr.bf16.mxu0 0
        %409 = vmatpush1.bf16.msra.mxu0 %v357
        %410 = vmatprep.subr.bf16.mxu0 0
        %411 = vmatpush1.bf16.msra.mxu0 %v358
        %412 = vmatprep.subr.bf16.mxu0 0
        %413 = vmatpush1.bf16.msra.mxu0 %v359
        %414 = vmatprep.subr.bf16.mxu0 0
        %415 = vmatpush1.bf16.msra.mxu0 %v382
        %416 = vmatprep.mubr.bf16.mxu0 %v378
        %417 = vmatmul.mubr.bf16.gmra.mrb[0].mxu0 %v278
        %v418 = vpop.f32.mrb[0].mxu0
        %v419 = vadd.f32 0.0, %v418
        %v420 = vpop.f32.mrb[0].mxu0
        %v421 = vpop.f32.mrb[0].mxu0
        %v422 = vadd.f32 0.0, %v421
        %v423 = vpop.f32.mrb[0].mxu0
        %424 = vdwg.mxu0
        %s425 = scalar_lea.vmem %s209, 16 [#allocation2]
        %v426 = vld [vmem:[%s425] sm:$0xff]
        %v427 = vld [vmem:[%s425 + $0x8] sm:$0xff]
        %v430 = vunpack.c.l.b16 %v426
        %v431 = vunpack.c.h.b16 %v426
        %v432 = vunpack.c.l.b16 %v427
        %v433 = vunpack.c.h.b16 %v427
        %v434 = vpack.c.b16 %v432, %v430
        %v435 = vpack.c.b16 %v433, %v431
        %v438 = vsel %vm376, %v435, 0
        %440 = vmatprep.subr.bf16.mxu0 0
        %441 = vmatpush1.bf16.msra.mxu0 %v345
        %442 = vmatprep.subr.bf16.mxu0 0
        %443 = vmatpush1.bf16.msra.mxu0 %v346
        %444 = vmatprep.subr.bf16.mxu0 0
        %445 = vmatpush1.bf16.msra.mxu0 %v347
        %446 = vmatprep.subr.bf16.mxu0 0
        %447 = vmatpush1.bf16.msra.mxu0 %v348
        %448 = vmatprep.subr.bf16.mxu0 0
        %449 = vmatpush1.bf16.msra.mxu0 %v349
        %450 = vmatprep.subr.bf16.mxu0 0
        %451 = vmatpush1.bf16.msra.mxu0 %v350
        %452 = vmatprep.subr.bf16.mxu0 0
        %453 = vmatpush1.bf16.msra.mxu0 %v351
        %454 = vmatprep.subr.bf16.mxu0 0
        %455 = vmatpush1.bf16.msra.mxu0 %v352
        %456 = vmatprep.subr.bf16.mxu0 0
        %457 = vmatpush1.bf16.msra.mxu0 %v353
        %458 = vmatprep.subr.bf16.mxu0 0
        %459 = vmatpush1.bf16.msra.mxu0 %v354
        %460 = vmatprep.subr.bf16.mxu0 0
        %461 = vmatpush1.bf16.msra.mxu0 %v355
        %462 = vmatprep.subr.bf16.mxu0 0
        %463 = vmatpush1.bf16.msra.mxu0 %v356
        %464 = vmatprep.subr.bf16.mxu0 0
        %465 = vmatpush1.bf16.msra.mxu0 %v357
        %466 = vmatprep.subr.bf16.mxu0 0
        %467 = vmatpush1.bf16.msra.mxu0 %v358
        %468 = vmatprep.subr.bf16.mxu0 0
        %469 = vmatpush1.bf16.msra.mxu0 %v359
        %470 = vmatprep.subr.bf16.mxu0 0
        %471 = vmatpush1.bf16.msra.mxu0 %v382
        %472 = vmatprep.mubr.bf16.mxu0 %v438
        %473 = vmatmul.mubr.bf16.gmra.mrb[0].mxu0 %v434
        %v474 = vpop.f32.mrb[0].mxu0
        %v475 = vadd.f32 0.0, %v474
        %v476 = vpop.f32.mrb[0].mxu0
        %v477 = vpop.f32.mrb[0].mxu0
        %v478 = vadd.f32 0.0, %v477
        %v479 = vpop.f32.mrb[0].mxu0
        %480 = vdwg.mxu0
        %s481 = scalar_lea.vmem %s209, 32 [#allocation2]
        %v482 = vld [vmem:[%s481] sm:$0xff]
        %v483 = vld [vmem:[%s481 + $0x8] sm:$0xff]
        %v486 = vunpack.c.l.b16 %v482
        %v487 = vunpack.c.h.b16 %v482
        %v488 = vunpack.c.l.b16 %v483
        %v489 = vunpack.c.h.b16 %v483
        %v490 = vpack.c.b16 %v488, %v486
        %v491 = vpack.c.b16 %v489, %v487
        %v494 = vsel %vm376, %v491, 0
        %496 = vmatprep.subr.bf16.mxu0 0
        %497 = vmatpush1.bf16.msra.mxu0 %v345
        %498 = vmatprep.subr.bf16.mxu0 0
        %499 = vmatpush1.bf16.msra.mxu0 %v346
        %500 = vmatprep.subr.bf16.mxu0 0
        %501 = vmatpush1.bf16.msra.mxu0 %v347
        %502 = vmatprep.subr.bf16.mxu0 0
        %503 = vmatpush1.bf16.msra.mxu0 %v348
        %504 = vmatprep.subr.bf16.mxu0 0
        %505 = vmatpush1.bf16.msra.mxu0 %v349
        %506 = vmatprep.subr.bf16.mxu0 0
        %507 = vmatpush1.bf16.msra.mxu0 %v350
        %508 = vmatprep.subr.bf16.mxu0 0
        %509 = vmatpush1.bf16.msra.mxu0 %v351
        %510 = vmatprep.subr.bf16.mxu0 0
        %511 = vmatpush1.bf16.msra.mxu0 %v352
        %512 = vmatprep.subr.bf16.mxu0 0
        %513 = vmatpush1.bf16.msra.mxu0 %v353
        %514 = vmatprep.subr.bf16.mxu0 0
        %515 = vmatpush1.bf16.msra.mxu0 %v354
        %516 = vmatprep.subr.bf16.mxu0 0
        %517 = vmatpush1.bf16.msra.mxu0 %v355
        %518 = vmatprep.subr.bf16.mxu0 0
        %519 = vmatpush1.bf16.msra.mxu0 %v356
        %520 = vmatprep.subr.bf16.mxu0 0
        %521 = vmatpush1.bf16.msra.mxu0 %v357
        %522 = vmatprep.subr.bf16.mxu0 0
        %523 = vmatpush1.bf16.msra.mxu0 %v358
        %524 = vmatprep.subr.bf16.mxu0 0
        %525 = vmatpush1.bf16.msra.mxu0 %v359
        %526 = vmatprep.subr.bf16.mxu0 0
        %527 = vmatpush1.bf16.msra.mxu0 %v382
        %528 = vmatprep.mubr.bf16.mxu0 %v494
        %529 = vmatmul.mubr.bf16.gmra.mrb[0].mxu0 %v490
        %v530 = vpop.f32.mrb[0].mxu0
        %v531 = vadd.f32 0.0, %v530
        %v532 = vpop.f32.mrb[0].mxu0
        %v533 = vpop.f32.mrb[0].mxu0
        %v534 = vadd.f32 0.0, %v533
        %v535 = vpop.f32.mrb[0].mxu0
        %536 = vdwg.mxu0
        %s537 = scalar_lea.vmem %s209, 48 [#allocation2]
        %v538 = vld [vmem:[%s537] sm:$0xff]
        %v539 = vld [vmem:[%s537 + $0x8] sm:$0xff]
        %v542 = vunpack.c.l.b16 %v538
        %v543 = vunpack.c.h.b16 %v538
        %v544 = vunpack.c.l.b16 %v539
        %v545 = vunpack.c.h.b16 %v539
        %v546 = vpack.c.b16 %v544, %v542
        %v547 = vpack.c.b16 %v545, %v543
        %v550 = vsel %vm376, %v547, 0
        %552 = vmatprep.subr.bf16.mxu0 0
        %553 = vmatpush1.bf16.msra.mxu0 %v345
        %554 = vmatprep.subr.bf16.mxu0 0
        %555 = vmatpush1.bf16.msra.mxu0 %v346
        %556 = vmatprep.subr.bf16.mxu0 0
        %557 = vmatpush1.bf16.msra.mxu0 %v347
        %558 = vmatprep.subr.bf16.mxu0 0
        %559 = vmatpush1.bf16.msra.mxu0 %v348
        %560 = vmatprep.subr.bf16.mxu0 0
        %561 = vmatpush1.bf16.msra.mxu0 %v349
        %562 = vmatprep.subr.bf16.mxu0 0
        %563 = vmatpush1.bf16.msra.mxu0 %v350
        %564 = vmatprep.subr.bf16.mxu0 0
        %565 = vmatpush1.bf16.msra.mxu0 %v351
        %566 = vmatprep.subr.bf16.mxu0 0
        %567 = vmatpush1.bf16.msra.mxu0 %v352
        %568 = vmatprep.subr.bf16.mxu0 0
        %569 = vmatpush1.bf16.msra.mxu0 %v353
        %570 = vmatprep.subr.bf16.mxu0 0
        %571 = vmatpush1.bf16.msra.mxu0 %v354
        %572 = vmatprep.subr.bf16.mxu0 0
        %573 = vmatpush1.bf16.msra.mxu0 %v355
        %574 = vmatprep.subr.bf16.mxu0 0
        %575 = vmatpush1.bf16.msra.mxu0 %v356
        %576 = vmatprep.subr.bf16.mxu0 0
        %577 = vmatpush1.bf16.msra.mxu0 %v357
        %578 = vmatprep.subr.bf16.mxu0 0
        %579 = vmatpush1.bf16.msra.mxu0 %v358
        %580 = vmatprep.subr.bf16.mxu0 0
        %581 = vmatpush1.bf16.msra.mxu0 %v359
        %582 = vmatprep.subr.bf16.mxu0 0
        %583 = vmatpush1.bf16.msra.mxu0 %v382
        %584 = vmatprep.mubr.bf16.mxu0 %v550
        %585 = vmatmul.mubr.bf16.gmra.mrb[0].mxu0 %v546
        %v586 = vpop.f32.mrb[0].mxu0
        %v587 = vadd.f32 0.0, %v586
        %v588 = vpop.f32.mrb[0].mxu0
        %v589 = vpop.f32.mrb[0].mxu0
        %v590 = vadd.f32 0.0, %v589
        %v591 = vpop.f32.mrb[0].mxu0
        %592 = vdwg.mxu0
        %v593 = vmax.f32 %v419, %v475
        %v594 = vmax.f32 %v422, %v478
        %v595 = vmax.f32 %v531, %v587
        %v596 = vmax.f32 %v534, %v590
        %v597 = vmax.f32 %v593, %v595
        %v598 = vmax.f32 %v594, %v596
        %v599 = vld [vmem:[%s2] sm:$0x1]
        %v601 = vlaneseq
        %v602 = vshrl.u32 %v601, 7
        %v603 = vsub.s32 0, %v602
        %v604 = vrot.slane %v599, %v603
        %v606 = vadd.f32 %v597, %v604
        %v607 = vadd.f32 %v598, %v604
        %v608 = vmax.f32 %v606, 0.0
        %v609 = vmax.f32 %v607, 0.0
        %v610 = vpack.c.bf16 %v609, %v608
        %v612 = vunpack.c.l.b16 %v610
        %v613 = vunpack.c.h.b16 %v610
        %v614 = vpack.c.b16 %v612, %v612
        %v615 = vpack.c.b16 %v613, %v613
        %vm618 = vcmask 158720
        %619 = vst.msk [vmem:[%s235] sm:$0xf] %vm618, %v614
        %620 = vst.msk [vmem:[%s235 + $0x4] sm:$0xf] %vm618, %v615
        %s621 = smul.u32 2, %s14
        %p622 = scmp.lt.s32.totalorder %s621, 3
        %s623 = scalar_select %p622, %s621, 3
        %s624 = smul.addr %s623, 4
        %s625 = scalar_lea.vmem %s3, %s624
        // Predicated region
        $region71: #{cnn_mnist_forward.4} parent=65 // pred_check
          %p626 = pneg %p100
        $region72: #{cnn_mnist_forward.4} parent=65 // pred_check_branch
          %628 = sbr.rel (%p626) target = $region74
        $region73: #{cnn_mnist_forward.4} parent=65 // pred_region
          %s629 = smul.u32 2, %s14
        $region74: #{cnn_mnist_forward.4} parent=65 // pred_fallthru
          _
      $region66: #{cnn_mnist_forward.4} parent=5 // pred_fallthru
        _
      %p630 = scmp.le.s32.totalorder 2, %s9
      // Predicated region
      $region75: #{cnn_mnist_forward.4} parent=5 // pred_check
        %p631 = pneg %p630
      $region76: #{cnn_mnist_forward.4} parent=5 // pred_check_branch
        %633 = sbr.rel (%p631) target = $region78
      $region77: #{cnn_mnist_forward.4} parent=5 // pred_region
        %s634 = ssub.s32 %s9, 2
        // Predicated region
        $region79: #{cnn_mnist_forward.4} parent=77 // pred_check
          %p635 = pneg %p106
        $region80: #{cnn_mnist_forward.4} parent=77 // pred_check_branch
          %637 = sbr.rel (%p635) target = $region82
        $region81: #{cnn_mnist_forward.4} parent=77 // pred_region
          %s638 = smul.u32 2, %s15
          %p639 = scmp.lt.s32.totalorder %s638, 3
          %s640 = scalar_select %p639, %s638, 3
          %s641 = smul.addr %s640, 4
          %s642 = scalar_lea.vmem %s3, %s641
        $region82: #{cnn_mnist_forward.4} parent=77 // pred_fallthru
          _
      $region78: #{cnn_mnist_forward.4} parent=5 // pred_fallthru
        _
    $region6: #{cnn_mnist_forward.4} parent=1 // loop_footer
      %s13 = sadd.s32 1, %s9
    $region7: #{cnn_mnist_forward.4} parent=1 // loop_footer_branch
      %8 = sbr.rel target = $region3
    $region8: #{cnn_mnist_forward.4} parent=1 // loop_exit
      _

// kernel: cnn_mnist_forward.5
$region0: #{cnn_mnist_forward.5}
  #allocation0 [shape = 'u32[]', space=smem, size = 0x4, offset = 0x4, fixed_abs, tag = 'smem constant byte address 0x4 - core index']
  #allocation1 [shape = 'u32[144,128]{1,0:T(1,128)}', space=vmem, size = 0x12000, scoped, tag = 'internal scratch']
  %s0 = inlined_call_operand.vmem [shape: bf16[2,320], index: 0, kind: input, shape index: {}]
  %s1 = inlined_call_operand.vmem [shape: bf16[320,50], index: 1, kind: input, shape index: {}]
  %s2 = inlined_call_operand.vmem [shape: f32[1,50], index: 2, kind: input, shape index: {}]
  %s3 = inlined_call_operand.vmem [shape: bf16[50,10], index: 3, kind: input, shape index: {}]
  %s4 = inlined_call_operand.vmem [shape: f32[1,10], index: 4, kind: input, shape index: {}]
  %s5 = inlined_call_operand.hbm [shape: f32[2,10], index: 5, kind: output, shape index: {}]
  %s6 = sld [smem:[#allocation0]]
  $region30: #{cnn_mnist_forward.5} parent=0
    _
  %s8 = ssub.s32 1, %s6
  %s9 = scalar_select 0, %s8, %s6
  $region1: #{cnn_mnist_forward.5} parent=0
    #allocation2 [shape = 'u8[1024]{0}', space=vmem, size = 0x400, scoped, tag = 'output window, operand 0, single buffered']
    #allocation3 [shape = 's32[1]{0}', space=sflag, size = 0x4, scoped, tag = 'scoped memory for cnn_mnist_forward.5']
    %10 = vsyncpa [#allocation3], 0
    // Predicated region
    $region2: #{cnn_mnist_forward.5} parent=1 // pred_check
      _
    $region3: #{cnn_mnist_forward.5} parent=1 // pred_check_branch
      %12 = sbr.rel (0) target = $region5
    $region4: #{cnn_mnist_forward.5} parent=1 // pred_region
      _
    $region5: #{cnn_mnist_forward.5} parent=1 // pred_fallthru
      _
    // Predicated region
    $region6: #{cnn_mnist_forward.5} parent=1 // pred_check
      _
    $region7: #{cnn_mnist_forward.5} parent=1 // pred_check_branch
      %14 = sbr.rel (0) target = $region9
    $region8: #{cnn_mnist_forward.5} parent=1 // pred_region
      _
    $region9: #{cnn_mnist_forward.5} parent=1 // pred_fallthru
      _
    // Predicated region
    $region10: #{cnn_mnist_forward.5} parent=1 // pred_check
      _
    $region11: #{cnn_mnist_forward.5} parent=1 // pred_check_branch
      %16 = sbr.rel (0) target = $region13
    $region12: #{cnn_mnist_forward.5} parent=1 // pred_region
      _
    $region13: #{cnn_mnist_forward.5} parent=1 // pred_fallthru
      _
    // Predicated region
    $region14: #{cnn_mnist_forward.5} parent=1 // pred_check
      _
    $region15: #{cnn_mnist_forward.5} parent=1 // pred_check_branch
      %18 = sbr.rel (0) target = $region17
    $region16: #{cnn_mnist_forward.5} parent=1 // pred_region
      _
    $region17: #{cnn_mnist_forward.5} parent=1 // pred_fallthru
      _
    // Predicated region
    $region18: #{cnn_mnist_forward.5} parent=1 // pred_check
      _
    $region19: #{cnn_mnist_forward.5} parent=1 // pred_check_branch
      %20 = sbr.rel (0) target = $region21
    $region20: #{cnn_mnist_forward.5} parent=1 // pred_region
      _
    $region21: #{cnn_mnist_forward.5} parent=1 // pred_fallthru
      _
    %v22 = vld [vmem:[%s0] sm:$0x7]
    %v23 = vld [vmem:[%s1] sm:$0xf]
    %v24 = vld [vmem:[%s1 + $0x4] sm:$0xf]
    %v25 = vld [vmem:[%s1 + $0x8] sm:$0xf]
    %v26 = vld [vmem:[%s1 + $0xc] sm:$0xf]
    %v27 = vld [vmem:[%s1 + $0x10] sm:$0xf]
    %v28 = vld [vmem:[%s1 + $0x14] sm:$0xf]
    %v29 = vld [vmem:[%s1 + $0x18] sm:$0xf]
    %v30 = vld [vmem:[%s1 + $0x1c] sm:$0xf]
    %v31 = vld [vmem:[%s1 + $0x20] sm:$0xf]
    %v32 = vld [vmem:[%s1 + $0x24] sm:$0xf]
    %v33 = vld [vmem:[%s1 + $0x28] sm:$0xf]
    %v34 = vld [vmem:[%s1 + $0x2c] sm:$0xf]
    %v35 = vld [vmem:[%s1 + $0x30] sm:$0xf]
    %v36 = vld [vmem:[%s1 + $0x34] sm:$0xf]
    %v37 = vld [vmem:[%s1 + $0x38] sm:$0xf]
    %v38 = vld [vmem:[%s1 + $0x3c] sm:$0xf]
    %v39 = vld [vmem:[%s1 + $0x40] sm:$0xf]
    %v40 = vld [vmem:[%s1 + $0x44] sm:$0xf]
    %v41 = vld [vmem:[%s1 + $0x48] sm:$0xf]
    %v42 = vld [vmem:[%s1 + $0x4c] sm:$0xf]
    %v43 = vld [vmem:[%s1 + $0x50] sm:$0xf]
    %v44 = vld [vmem:[%s1 + $0x54] sm:$0xf]
    %v45 = vld [vmem:[%s1 + $0x58] sm:$0xf]
    %v46 = vld [vmem:[%s1 + $0x5c] sm:$0xf]
    %v47 = vld [vmem:[%s1 + $0x60] sm:$0xf]
    %v48 = vld [vmem:[%s1 + $0x64] sm:$0xf]
    %v49 = vld [vmem:[%s1 + $0x68] sm:$0xf]
    %v50 = vld [vmem:[%s1 + $0x6c] sm:$0xf]
    %v51 = vld [vmem:[%s1 + $0x70] sm:$0xf]
    %v52 = vld [vmem:[%s1 + $0x74] sm:$0xf]
    %v53 = vld [vmem:[%s1 + $0x78] sm:$0xf]
    %v54 = vld [vmem:[%s1 + $0x7c] sm:$0xf]
    %v55 = vld [vmem:[%s1 + $0x80] sm:$0xf]
    %v56 = vld [vmem:[%s1 + $0x84] sm:$0xf]
    %v57 = vld [vmem:[%s1 + $0x88] sm:$0xf]
    %v58 = vld [vmem:[%s1 + $0x8c] sm:$0xf]
    %v59 = vld [vmem:[%s1 + $0x90] sm:$0xf]
    %v60 = vld [vmem:[%s1 + $0x94] sm:$0xf]
    %v61 = vld [vmem:[%s1 + $0x98] sm:$0xf]
    %v62 = vld [vmem:[%s1 + $0x9c] sm:$0xf]
    %v63 = vld [vmem:[%s2] sm:$0x1]
    %v65 = vlaneseq
    %v66 = vshrl.u32 %v65, 7
    %v67 = vsub.s32 0, %v66
    %v68 = vrot.slane %v63, %v67
    %v72 = vunpack.c.l.s4 1966171168
    %v73 = vunpack.c.0.s8 %v72
    %v74 = vlaneseq
    %v75 = vshrl.u32 %v74, 7
    %v76 = vsub.s32 %v73, %v75
    %v77 = vrot.slane %v22, %v76
    %v78 = vcombine.high %v77, %v77
    %v80 = vunpack.c.l.s4 1966171168
    %v81 = vunpack.c.0.s8 %v80
    %v82 = vlaneseq
    %v83 = vshrl.u32 %v82, 7
    %v84 = vsub.s32 %v81, %v83
    %v85 = vrot.slane %v77, %v84
    %v87 = vunpack.c.l.s4 1966171168
    %v88 = vunpack.c.0.s8 %v87
    %v89 = vlaneseq
    %v90 = vshrl.u32 %v89, 7
    %v91 = vsub.s32 %v88, %v90
    %v92 = vrot.slane %v78, %v91
    %v93 = vcombine.high %v85, %v85
    %v136 = vunpack.c.l.b16 %v23
    %v137 = vunpack.c.l.b16 %v24
    %v138 = vunpack.c.l.b16 %v25
    %v139 = vunpack.c.l.b16 %v26
    %v140 = vunpack.c.l.b16 %v27
    %v141 = vunpack.c.l.b16 %v28
    %v142 = vunpack.c.l.b16 %v29
    %v143 = vunpack.c.l.b16 %v30
    %v144 = vunpack.c.l.b16 %v31
    %v145 = vunpack.c.l.b16 %v32
    %v146 = vunpack.c.l.b16 %v33
    %v147 = vunpack.c.l.b16 %v34
    %v148 = vunpack.c.l.b16 %v35
    %v149 = vunpack.c.l.b16 %v36
    %v150 = vunpack.c.l.b16 %v37
    %v151 = vunpack.c.l.b16 %v38
    %v152 = vunpack.c.l.b16 %v39
    %v153 = vunpack.c.l.b16 %v40
    %v154 = vunpack.c.l.b16 %v41
    %v155 = vunpack.c.l.b16 %v42
    %v156 = vunpack.c.l.b16 %v43
    %v157 = vunpack.c.l.b16 %v44
    %v158 = vunpack.c.l.b16 %v45
    %v159 = vunpack.c.l.b16 %v46
    %v160 = vunpack.c.l.b16 %v47
    %v161 = vunpack.c.l.b16 %v48
    %v162 = vunpack.c.l.b16 %v49
    %v163 = vunpack.c.l.b16 %v50
    %v164 = vunpack.c.l.b16 %v51
    %v165 = vunpack.c.l.b16 %v52
    %v166 = vunpack.c.l.b16 %v53
    %v167 = vunpack.c.l.b16 %v54
    %v168 = vunpack.c.l.b16 %v55
    %v169 = vunpack.c.l.b16 %v56
    %v170 = vunpack.c.l.b16 %v57
    %v171 = vunpack.c.l.b16 %v58
    %v172 = vunpack.c.l.b16 %v59
    %v173 = vunpack.c.l.b16 %v60
    %v174 = vunpack.c.l.b16 %v61
    %v175 = vunpack.c.l.b16 %v62
    %v176 = vpack.c.b16 %v137, %v136
    %v177 = vpack.c.b16 %v139, %v138
    %v178 = vpack.c.b16 %v141, %v140
    %v179 = vpack.c.b16 %v143, %v142
    %v180 = vpack.c.b16 %v145, %v144
    %v181 = vpack.c.b16 %v147, %v146
    %v182 = vpack.c.b16 %v149, %v148
    %v183 = vpack.c.b16 %v151, %v150
    %v184 = vpack.c.b16 %v153, %v152
    %v185 = vpack.c.b16 %v155, %v154
    %v186 = vpack.c.b16 %v157, %v156
    %v187 = vpack.c.b16 %v159, %v158
    %v188 = vpack.c.b16 %v161, %v160
    %v189 = vpack.c.b16 %v163, %v162
    %v190 = vpack.c.b16 %v165, %v164
    %v191 = vpack.c.b16 %v167, %v166
    %v192 = vpack.c.b16 %v169, %v168
    %v193 = vpack.c.b16 %v171, %v170
    %v194 = vpack.c.b16 %v173, %v172
    %v195 = vpack.c.b16 %v175, %v174
    %vm216 = vcmask 523264
    %v218 = vsel %vm216, %v93, 0
    %220 = vmatprep.subr.bf16.mxu0 0
    %221 = vmatpush1.bf16.msra.mxu0 %v176
    %222 = vmatprep.subr.bf16.mxu0 0
    %223 = vmatpush1.bf16.msra.mxu0 %v177
    %224 = vmatprep.subr.bf16.mxu0 0
    %225 = vmatpush1.bf16.msra.mxu0 %v178
    %226 = vmatprep.subr.bf16.mxu0 0
    %227 = vmatpush1.bf16.msra.mxu0 %v179
    %228 = vmatprep.subr.bf16.mxu0 0
    %229 = vmatpush1.bf16.msra.mxu0 %v180
    %230 = vmatprep.subr.bf16.mxu0 0
    %231 = vmatpush1.bf16.msra.mxu0 %v181
    %232 = vmatprep.subr.bf16.mxu0 0
    %233 = vmatpush1.bf16.msra.mxu0 %v182
    %234 = vmatprep.subr.bf16.mxu0 0
    %235 = vmatpush1.bf16.msra.mxu0 %v183
    %236 = vmatprep.subr.bf16.mxu0 0
    %237 = vmatpush1.bf16.msra.mxu0 %v184
    %238 = vmatprep.subr.bf16.mxu0 0
    %239 = vmatpush1.bf16.msra.mxu0 %v185
    %240 = vmatprep.subr.bf16.mxu0 0
    %241 = vmatpush1.bf16.msra.mxu0 %v186
    %242 = vmatprep.subr.bf16.mxu0 0
    %243 = vmatpush1.bf16.msra.mxu0 %v187
    %244 = vmatprep.subr.bf16.mxu0 0
    %245 = vmatpush1.bf16.msra.mxu0 %v188
    %246 = vmatprep.subr.bf16.mxu0 0
    %247 = vmatpush1.bf16.msra.mxu0 %v189
    %248 = vmatprep.subr.bf16.mxu0 0
    %249 = vmatpush1.bf16.msra.mxu0 %v190
    %250 = vmatprep.subr.bf16.mxu0 0
    %251 = vmatpush1.bf16.msra.mxu0 %v191
    %252 = vmatprep.mubr.bf16.mxu0 %v92
    %253 = vmatmul.mubr.bf16.gmra.mrb[0].mxu0 %v85
    %v254 = vpop.f32.mrb[0].mxu0
    %v255 = vadd.f32 %v68, %v254
    %v256 = vpop.f32.mrb[0].mxu0
    %v257 = vpop.f32.mrb[0].mxu0
    %v258 = vpop.f32.mrb[0].mxu0
    %259 = vdwg.mxu0
    %260 = vmatprep.subr.bf16.mxu0 0
    %261 = vmatpush1.bf16.msra.mxu0 %v192
    %262 = vmatprep.subr.bf16.mxu0 0
    %263 = vmatpush1.bf16.msra.mxu0 %v193
    %264 = vmatprep.subr.bf16.mxu0 0
    %265 = vmatpush1.bf16.msra.mxu0 %v194
    %266 = vmatprep.subr.bf16.mxu0 0
    %267 = vmatpush1.bf16.msra.mxu0 %v195
    %268 = vmatprep.subr.bf16.mxu0 0
    %269 = vmatpush1.bf16.msra.mxu0 0
    %270 = vmatprep.subr.bf16.mxu0 0
    %271 = vmatpush1.bf16.msra.mxu0 0
    %272 = vmatprep.subr.bf16.mxu0 0
    %273 = vmatpush1.bf16.msra.mxu0 0
    %274 = vmatprep.subr.bf16.mxu0 0
    %275 = vmatpush1.bf16.msra.mxu0 0
    %276 = vmatprep.subr.bf16.mxu0 0
    %277 = vmatpush1.bf16.msra.mxu0 0
    %278 = vmatprep.subr.bf16.mxu0 0
    %279 = vmatpush1.bf16.msra.mxu0 0
    %280 = vmatprep.subr.bf16.mxu0 0
    %281 = vmatpush1.bf16.msra.mxu0 0
    %282 = vmatprep.subr.bf16.mxu0 0
    %283 = vmatpush1.bf16.msra.mxu0 0
    %284 = vmatprep.subr.bf16.mxu0 0
    %285 = vmatpush1.bf16.msra.mxu0 0
    %286 = vmatprep.subr.bf16.mxu0 0
    %287 = vmatpush1.bf16.msra.mxu0 0
    %288 = vmatprep.subr.bf16.mxu0 0
    %289 = vmatpush1.bf16.msra.mxu0 0
    %290 = vmatprep.subr.bf16.mxu0 0
    %291 = vmatpush1.bf16.msra.mxu0 0
    %292 = vmatprep.mubr.bf16.mxu0 0
    %293 = vmatmul.mubr.bf16.gmra.mrb[0].mxu0 %v218
    %v294 = vpop.f32.mrb[0].mxu0
    %v295 = vadd.f32 %v255, %v294
    %v296 = vpop.f32.mrb[0].mxu0
    %v297 = vpop.f32.mrb[0].mxu0
    %v298 = vpop.f32.mrb[0].mxu0
    %299 = vdwg.mxu0
    %v300 = vmax.f32 %v295, 0.0
    %v301 = vpack.c.bf16 %v300, %v300
    %v302 = vld [vmem:[%s3] sm:$0xf]
    %v303 = vld [vmem:[%s3 + $0x4] sm:$0xf]
    %v304 = vld [vmem:[%s3 + $0x8] sm:$0xf]
    %v305 = vld [vmem:[%s3 + $0xc] sm:$0xf]
    %v306 = vld [vmem:[%s3 + $0x10] sm:$0xf]
    %v307 = vld [vmem:[%s3 + $0x14] sm:$0xf]
    %v308 = vld [vmem:[%s3 + $0x18] sm:$0x1]
    %v309 = vld [vmem:[%s4] sm:$0x1]
    %v311 = vlaneseq
    %v312 = vshrl.u32 %v311, 7
    %v313 = vsub.s32 0, %v312
    %v314 = vrot.slane %v309, %v313
    %v323 = vunpack.c.l.b16 %v302
    %v324 = vunpack.c.l.b16 %v303
    %v325 = vunpack.c.l.b16 %v304
    %v326 = vunpack.c.l.b16 %v305
    %v327 = vunpack.c.l.b16 %v306
    %v328 = vunpack.c.l.b16 %v307
    %v329 = vunpack.c.l.b16 %v308
    %v330 = vpack.c.b16 %v324, %v323
    %v331 = vpack.c.b16 %v326, %v325
    %v332 = vpack.c.b16 %v328, %v327
    %v333 = vpack.c.b16 %v329, %v329
    %vm337 = vcmask 408576
    %v339 = vsel %vm337, %v301, 0
    %vm341 = vcmask 1040384
    %v343 = vsel %vm341, %v333, 0
    %345 = vmatprep.subr.bf16.mxu0 0
    %346 = vmatpush1.bf16.msra.mxu0 %v330
    %347 = vmatprep.subr.bf16.mxu0 0
    %348 = vmatpush1.bf16.msra.mxu0 %v331
    %349 = vmatprep.subr.bf16.mxu0 0
    %350 = vmatpush1.bf16.msra.mxu0 %v332
    %351 = vmatprep.subr.bf16.mxu0 0
    %352 = vmatpush1.bf16.msra.mxu0 %v343
    %353 = vmatprep.subr.bf16.mxu0 0
    %354 = vmatpush1.bf16.msra.mxu0 0
    %355 = vmatprep.subr.bf16.mxu0 0
    %356 = vmatpush1.bf16.msra.mxu0 0
    %357 = vmatprep.subr.bf16.mxu0 0
    %358 = vmatpush1.bf16.msra.mxu0 0
    %359 = vmatprep.subr.bf16.mxu0 0
    %360 = vmatpush1.bf16.msra.mxu0 0
    %361 = vmatprep.subr.bf16.mxu0 0
    %362 = vmatpush1.bf16.msra.mxu0 0
    %363 = vmatprep.subr.bf16.mxu0 0
    %364 = vmatpush1.bf16.msra.mxu0 0
    %365 = vmatprep.subr.bf16.mxu0 0
    %366 = vmatpush1.bf16.msra.mxu0 0
    %367 = vmatprep.subr.bf16.mxu0 0
    %368 = vmatpush1.bf16.msra.mxu0 0
    %369 = vmatprep.subr.bf16.mxu0 0
    %370 = vmatpush1.bf16.msra.mxu0 0
    %371 = vmatprep.subr.bf16.mxu0 0
    %372 = vmatpush1.bf16.msra.mxu0 0
    %373 = vmatprep.subr.bf16.mxu0 0
    %374 = vmatpush1.bf16.msra.mxu0 0
    %375 = vmatprep.subr.bf16.mxu0 0
    %376 = vmatpush1.bf16.msra.mxu0 0
    %377 = vmatprep.mubr.bf16.mxu0 0
    %378 = vmatmul.mubr.bf16.gmra.mrb[0].mxu0 %v339
    %v379 = vpop.f32.mrb[0].mxu0
    %v380 = vadd.f32 %v314, %v379
    %v381 = vpop.f32.mrb[0].mxu0
    %v382 = vpop.f32.mrb[0].mxu0
    %v383 = vpop.f32.mrb[0].mxu0
    %384 = vdwg.mxu0
    %vm385 = vcmask 74752
    %v386 = vsel %vm385, %v380, -inf
    %387 = vmax.xlane.f32.xlu0 %v386
    %v388 = vpop.xlane.xlu0 %387
    %v389 = vsub.f32 %v380, %v388
    %v390 = vmul.f32 %v389, 1.442695
    %v391 = vpow.pop %v390
    %v392 = vsel %vm385, %v391, 0.0
    %393 = vadd.xlane.f32.xlu0 %v392
    %v394 = vpop.xlane.xlu0 %393
    %v395 = vlog2.pop %v394
    %v396 = vmul.f32 %v395, 0.6931472
    %v397 = vsub.f32 %v389, %v396
    %398 = vst.msk [vmem:[#allocation2] sm:$0x3] %vm385, %v397
    // Predicated region
    $region22: #{cnn_mnist_forward.5} parent=1 // pred_check
      _
    $region23: #{cnn_mnist_forward.5} parent=1 // pred_check_branch
      %400 = sbr.rel (0) target = $region25
    $region24: #{cnn_mnist_forward.5} parent=1 // pred_region
      %s402 = ssub.s32 32, 32
      %403 = vsyncadd [#allocation3], %s402
      %s405 = sshll.u32 [#allocation2], 4
      %s406 = int_to_ptr.vmem [resolvable:$true] %s405
      %408 = dma.vmem_to_hbm [thread:$0]  %s406, 32, %s5, [#allocation3]
    $region25: #{cnn_mnist_forward.5} parent=1 // pred_fallthru
      _
    // Predicated region
    $region26: #{cnn_mnist_forward.5} parent=1 // pred_check
      _
    $region27: #{cnn_mnist_forward.5} parent=1 // pred_check_branch
      %410 = sbr.rel (0) target = $region29
    $region28: #{cnn_mnist_forward.5} parent=1 // pred_region
      %411 = dma.done [#allocation3], 32
    $region29: #{cnn_mnist_forward.5} parent=1 // pred_fallthru
      _
    %412 = vsyncpa [#allocation3], 1

</llo_original>
